<compile_context>
chip_gen: v7x
topology: tpu7x:2x2x1
jax: 0.10.0
libtpu: 0.0.40
codegen_flags: <defaults>
</compile_context>

<pallas_src>
import jax
import jax.numpy as jnp
from jax.experimental import pallas as pl
from jax.experimental.pallas import tpu as pltpu

_BN_EPS = 1e-5

_VMEM = pl.BlockSpec(memory_space=pltpu.MemorySpace.VMEM)
_PARAMS = pltpu.CompilerParams(vmem_limit_bytes=32 * 1024 * 1024)


def _relu_bn(y, gamma, beta):
    """BatchNorm(ReLU(y)) with batch statistics over axis 0 (training-mode BN)."""
    y = jnp.maximum(y, 0.0)
    inv = 1.0 / y.shape[0]
    mean = jnp.sum(y, axis=0, keepdims=True) * inv
    ex2 = jnp.sum(y * y, axis=0, keepdims=True) * inv
    var = jnp.maximum(ex2 - mean * mean, 0.0)              # one-pass var, clamped
    return (y - mean) * (jax.lax.rsqrt(var + _BN_EPS) * gamma) + beta


def _conv_kernel(cols_ref, w1_ref, b1_ref, g1_ref, be1_ref,
                 w2s_ref, b2_ref, g2_ref, be2_ref, o_ref):
    """conv1 + ReLU + BN2d + conv2 + ReLU + BN2d, all operands VMEM-resident.

    cols_ref : (N*64, 128) bf16  conv1 patches, 4 stride-2 phases packed on
               lanes (lane group g=2*ph+pw holds the 27(+5 pad) (kh,kw,cin) taps).
    w1_ref   : (128, 128) bf16   block-diagonal conv1 weight (one block/phase).
    w2s_ref  : (4, 128, 32) bf16 conv2 weights for the {unshifted, ho-1, wo-1,
               ho-1&wo-1} activation copies (rows = phase-group x cin).
    o_ref    : (N*64, 32) f32    BN(ReLU(conv2)), rows ordered (n, ho, wo).
    """
    nb = cols_ref.shape[0]
    f32 = jnp.float32

    # ---- conv1: one lane-dense (N*64,128)@(128,128) MXU matmul ----
    y = jnp.dot(cols_ref[...], w1_ref[...], preferred_element_type=f32)
    y = jnp.maximum(y + b1_ref[...], 0.0)

    # ---- BatchNorm2d(32): per-channel stats pooled over rows AND the 4 phase
    #      lane groups.  Lane rolls produce the per-channel totals already
    #      replicated onto every group (no lane concat / relayout needed). ----
    s = jnp.sum(y, axis=0, keepdims=True)
    ss = jnp.sum(y * y, axis=0, keepdims=True)

    def fold(v):                                            # (1,128) -> (1,128)
        return (v + pltpu.roll(v, 32, axis=1) + pltpu.roll(v, 64, axis=1)
                + pltpu.roll(v, 96, axis=1))

    inv = 1.0 / (4 * nb)
    mean = fold(s) * inv
    var = jnp.maximum(fold(ss) * inv - mean * mean, 0.0)
    y = (y - mean) * (jax.lax.rsqrt(var + _BN_EPS) * g1_ref[...]) + be1_ref[...]

    # ---- conv2 (3x3, stride 2, pad 1) as 4 accumulated K=128 matmuls ----
    # Rows are (n, ho, wo); the phase packing turns stride-2 taps into plain
    # row shifts:  -1 row == (ho, wo-1),  -8 rows == (ho-1, wo).
    # "same" zero padding == masking the wo==0 / ho==0 rows after BN.
    row = jax.lax.broadcasted_iota(jnp.int32, (nb, 128), 0)
    not_w0 = (row & 7) != 0                                 # wo > 0
    not_h0 = (row & 63) >= 8                                # ho > 0
    y_w = jnp.where(not_w0, pltpu.roll(y, 1, axis=0), 0.0)
    y_h = jnp.where(not_h0, pltpu.roll(y, 8, axis=0), 0.0)
    y_hw = jnp.where(not_h0, pltpu.roll(y_w, 8, axis=0), 0.0)

    def mm(a, t):
        return jnp.dot(a.astype(jnp.bfloat16), w2s_ref[t],
                       preferred_element_type=f32)

    acc = mm(y, 0) + mm(y_h, 1) + mm(y_w, 2) + mm(y_hw, 3)

    o_ref[...] = _relu_bn(acc + b2_ref[...], g2_ref[...], be2_ref[...])


def _fc_kernel(x_ref, w3_ref, b3_ref, g3_ref, be3_ref, w4_ref, b4_ref, o_ref):
    """fc1 (real K=2048 matmul) + ReLU + BN1d + fc2."""
    f32 = jnp.float32
    h = jnp.dot(x_ref[...], w3_ref[...], preferred_element_type=f32) + b3_ref[...]
    h = _relu_bn(h, g3_ref[...], be3_ref[...])
    o_ref[...] = (jnp.dot(h.astype(jnp.bfloat16), w4_ref[...],
                          preferred_element_type=f32) + b4_ref[...])


def _conv_call(cols1, pk, n):
    args = (cols1, pk["w1"], pk["b1"], pk["g1"], pk["be1"],
            pk["w2s"], pk["b2"], pk["g2"], pk["be2"])
    return pl.pallas_call(
        _conv_kernel,
        out_shape=jax.ShapeDtypeStruct((n * 64, 32), jnp.float32),
        in_specs=[_VMEM] * len(args),
        out_specs=_VMEM,
        compiler_params=_PARAMS,
    )(*args)


def _fc_call(flat, pk, n, nl):
    args = (flat, pk["w3"], pk["b3"], pk["g3"], pk["be3"], pk["w4"], pk["b4"])
    return pl.pallas_call(
        _fc_kernel,
        out_shape=jax.ShapeDtypeStruct((n, nl), jnp.float32),
        in_specs=[_VMEM] * len(args),
        out_specs=_VMEM,
        compiler_params=_PARAMS,
    )(*args)


def _conv1_patches_packed(x_nchw):
    """Host-side im2col for conv1 only (reads just x), phase-packed along lanes.

    Returns (N*64, 128) bf16: row (n, i, j); lane group g = 2*ph + pw holds the
    27 (kh, kw, cin) taps (+5 zero pad) of the conv1 output at (2i+ph, 2j+pw).
    """
    n = x_nchw.shape[0]
    x = jnp.transpose(x_nchw, (0, 2, 3, 1))                 # NHWC
    xp = jnp.pad(x, ((0, 0), (1, 1), (1, 1), (0, 0)))       # (N, 34, 34, 3)
    taps = [xp[:, kh:kh + 32:2, kw:kw + 32:2, :]            # (N, 16, 16, 3)
            for kh in range(3) for kw in range(3)]
    pt = jnp.stack(taps, axis=3).reshape(n, 16, 16, 27)     # cols = (kh, kw, cin)
    pt = jnp.pad(pt, ((0, 0), (0, 0), (0, 0), (0, 5)))      # 27 -> 32
    phases = [pt[:, ph::2, pw::2, :] for ph in (0, 1) for pw in (0, 1)]
    cols = jnp.concatenate(phases, axis=3)                  # (N, 8, 8, 128)
    return cols.reshape(n * 64, 128).astype(jnp.bfloat16)


def init_params(n_latent, key):
    """Parameters in PyTorch layout (Conv2d: (C_out,C_in,kH,kW); Linear: (out,in))."""
    ks = jax.random.split(key, 8)
    p = {}
    p["w1"] = 0.1 * jax.random.normal(ks[0], (32, 3, 3, 3), jnp.float32)
    p["b1"] = 0.01 * jax.random.normal(ks[1], (32,), jnp.float32)
    p["g1"] = jnp.ones((32,), jnp.float32)
    p["be1"] = jnp.zeros((32,), jnp.float32)
    p["w2"] = 0.05 * jax.random.normal(ks[2], (32, 32, 3, 3), jnp.float32)
    p["b2"] = 0.01 * jax.random.normal(ks[3], (32,), jnp.float32)
    p["g2"] = jnp.ones((32,), jnp.float32)
    p["be2"] = jnp.zeros((32,), jnp.float32)
    p["w3"] = 0.02 * jax.random.normal(ks[4], (n_latent, 32 * 8 * 8), jnp.float32)
    p["b3"] = 0.01 * jax.random.normal(ks[5], (n_latent,), jnp.float32)
    p["g3"] = jnp.ones((n_latent,), jnp.float32)
    p["be3"] = jnp.zeros((n_latent,), jnp.float32)
    p["w4"] = 0.1 * jax.random.normal(ks[6], (n_latent, n_latent), jnp.float32)
    p["b4"] = 0.01 * jax.random.normal(ks[7], (n_latent,), jnp.float32)
    return p


def prepare_params(p):
    """One-time host-side weight repacking (permute/pad weights, not activations)."""
    nl = p["w4"].shape[0]
    assert p["w3"].shape == (nl, 32 * 8 * 8)
    bf16 = jnp.bfloat16

    # conv1: (co,ci,kh,kw) -> rows (kh,kw,ci) padded 27->32, block-diag per phase.
    w1 = jnp.transpose(p["w1"], (2, 3, 1, 0)).reshape(27, 32)
    w1 = jnp.pad(w1, ((0, 5), (0, 0)))                      # (32, 32)
    w1blk = jnp.zeros((128, 128), jnp.float32)
    for g in range(4):
        w1blk = w1blk.at[g * 32:(g + 1) * 32, g * 32:(g + 1) * 32].set(w1)

    # conv2: one (128,32) weight per shifted-activation operand; row = g*32 + ci
    # where lane group g = 2*ph + pw is the conv1 output-parity phase.
    w2t = jnp.transpose(p["w2"], (2, 3, 1, 0))              # (kh, kw, ci, co)
    z = jnp.zeros((32, 32), jnp.float32)

    def groups(g0, g1, g2, g3):
        return jnp.concatenate([g0, g1, g2, g3], axis=0)    # (128, 32)

    w2s = jnp.stack([
        groups(w2t[1, 1], w2t[1, 2], w2t[2, 1], w2t[2, 2]),  # unshifted
        groups(z,         z,         w2t[0, 1], w2t[0, 2]),  # (ho-1, wo)
        groups(z,         w2t[1, 0], z,         w2t[2, 0]),  # (ho, wo-1)
        groups(z,         z,         z,         w2t[0, 0]),  # (ho-1, wo-1)
    ], axis=0)                                               # (4, 128, 32)

    # fc1: W3_pt[f, c*64 + s] -> W3[s*32 + c, f]  (kernel-1 output flattens as s*32+c).
    w3 = jnp.transpose(p["w3"].reshape(nl, 32, 64), (2, 1, 0)).reshape(2048, nl)
    w4 = p["w4"].T

    def row(v):
        return v.reshape(1, -1).astype(jnp.float32)

    def row4(v):                                             # per-channel -> 4 phase groups
        return jnp.tile(v, 4).reshape(1, -1).astype(jnp.float32)

    return dict(
        w1=w1blk.astype(bf16), b1=row4(p["b1"]), g1=row4(p["g1"]), be1=row4(p["be1"]),
        w2s=w2s.astype(bf16), b2=row(p["b2"]), g2=row(p["g2"]), be2=row(p["be2"]),
        w3=w3.astype(bf16), b3=row(p["b3"]), g3=row(p["g3"]), be3=row(p["be3"]),
        w4=w4.astype(bf16), b4=row(p["b4"]),
    )


@jax.jit
def encoder_forward(x_nchw, packed):
    n = x_nchw.shape[0]
    nl = packed["w4"].shape[1]
    cols1 = _conv1_patches_packed(x_nchw)                   # (N*64, 128) bf16
    y2 = _conv_call(cols1, packed, n)                       # (N*64, 32) f32, rows (n,ho,wo)
    # PyTorch's x.reshape(-1, 32*8*8) is channel-major; that ordering is folded
    # into the host-side W3 permutation, so this reshape is a free row-major
    # view at the XLA boundary (no in-kernel sublane->lane relayout needed).
    flat = y2.reshape(n, 32 * 8 * 8).astype(jnp.bfloat16)   # (N, 2048)
    return _fc_call(flat, packed, n, nl)                    # (N, n_latent) f32


if __name__ == "__main__":
    n_latent = 64
    key = jax.random.PRNGKey(0)
    k_x, k_p = jax.random.split(key)

    # Two stride-2 convs map 32x32 -> 8x8, so the module implies (N, 3, 32, 32) input.
    x = jax.random.normal(k_x, (2, 3, 32, 32), jnp.float32)
    params = init_params(n_latent, k_p)
    packed = prepare_params(params)

    out = encoder_forward(x, packed)
    out = jax.block_until_ready(out)
    assert out.shape == (2, n_latent), out.shape
    assert bool(jnp.all(jnp.isfinite(out)))
    print("KERNEL_OK")
</pallas_src>

<mosaic_0001>
module attributes {stable_mosaic.version = 11 : i64} {
  func.func @_conv_kernel(%arg0: memref<128x128xbf16, #tpu.memory_space<vmem>>, %arg1: memref<128x128xbf16, #tpu.memory_space<vmem>>, %arg2: memref<1x128xf32, #tpu.memory_space<vmem>>, %arg3: memref<1x128xf32, #tpu.memory_space<vmem>>, %arg4: memref<1x128xf32, #tpu.memory_space<vmem>>, %arg5: memref<4x128x32xbf16, #tpu.memory_space<vmem>>, %arg6: memref<1x32xf32, #tpu.memory_space<vmem>>, %arg7: memref<1x32xf32, #tpu.memory_space<vmem>>, %arg8: memref<1x32xf32, #tpu.memory_space<vmem>>, %arg9: memref<128x32xf32, #tpu.memory_space<vmem>>) attributes {dimension_semantics = [], scalar_prefetch = 0 : i64, scratch_operands = 0 : i64, tpu.core_type = #tpu.core_type<tc>} {
    %c0 = arith.constant 0 : index
    %c0_0 = arith.constant 0 : index
    %0 = vector.load %arg0[%c0, %c0_0] : memref<128x128xbf16, #tpu.memory_space<vmem>>, vector<128x128xbf16>
    %c0_1 = arith.constant 0 : index
    %c0_2 = arith.constant 0 : index
    %1 = vector.load %arg1[%c0_1, %c0_2] : memref<128x128xbf16, #tpu.memory_space<vmem>>, vector<128x128xbf16>
    %cst = arith.constant dense<0.000000e+00> : vector<128x128xf32>
    %2 = tpu.matmul %0, %1, %cst {dimension_numbers = #tpu.dot_dimension_numbers<[1], [0], [0], [1], [0, 0, 1, 1], [], []>} : vector<128x128xbf16>, vector<128x128xbf16>, vector<128x128xf32> -> vector<128x128xf32>
    %c0_3 = arith.constant 0 : index
    %c0_4 = arith.constant 0 : index
    %3 = vector.load %arg2[%c0_3, %c0_4] : memref<1x128xf32, #tpu.memory_space<vmem>>, vector<1x128xf32>
    %4 = vector.broadcast %3 : vector<1x128xf32> to vector<128x128xf32>
    %5 = arith.addf %2, %4 : vector<128x128xf32>
    %cst_5 = arith.constant 0.000000e+00 : f32
    %6 = vector.broadcast %cst_5 : f32 to vector<128x128xf32>
    %7 = arith.maximumf %5, %6 : vector<128x128xf32>
    %cst_6 = arith.constant dense<0.000000e+00> : vector<128xf32>
    %8 = vector.multi_reduction <add>, %7, %cst_6 [0] : vector<128x128xf32> to vector<128xf32>
    %9 = vector.shape_cast %8 : vector<128xf32> to vector<1x128xf32>
    %10 = arith.mulf %7, %7 : vector<128x128xf32>
    %cst_7 = arith.constant dense<0.000000e+00> : vector<128xf32>
    %11 = vector.multi_reduction <add>, %10, %cst_7 [0] : vector<128x128xf32> to vector<128xf32>
    %12 = vector.shape_cast %11 : vector<128xf32> to vector<1x128xf32>
    %c32_i32 = arith.constant 32 : i32
    %13 = tpu.dynamic_rotate %9 by %c32_i32 dim 1 : vector<1x128xf32>, i32 -> vector<1x128xf32>
    %14 = arith.addf %9, %13 : vector<1x128xf32>
    %c64_i32 = arith.constant 64 : i32
    %15 = tpu.dynamic_rotate %9 by %c64_i32 dim 1 : vector<1x128xf32>, i32 -> vector<1x128xf32>
    %16 = arith.addf %14, %15 : vector<1x128xf32>
    %c96_i32 = arith.constant 96 : i32
    %17 = tpu.dynamic_rotate %9 by %c96_i32 dim 1 : vector<1x128xf32>, i32 -> vector<1x128xf32>
    %18 = arith.addf %16, %17 : vector<1x128xf32>
    %cst_8 = arith.constant 0.001953125 : f32
    %19 = vector.broadcast %cst_8 : f32 to vector<1x128xf32>
    %20 = arith.mulf %18, %19 : vector<1x128xf32>
    %c32_i32_9 = arith.constant 32 : i32
    %21 = tpu.dynamic_rotate %12 by %c32_i32_9 dim 1 : vector<1x128xf32>, i32 -> vector<1x128xf32>
    %22 = arith.addf %12, %21 : vector<1x128xf32>
    %c64_i32_10 = arith.constant 64 : i32
    %23 = tpu.dynamic_rotate %12 by %c64_i32_10 dim 1 : vector<1x128xf32>, i32 -> vector<1x128xf32>
    %24 = arith.addf %22, %23 : vector<1x128xf32>
    %c96_i32_11 = arith.constant 96 : i32
    %25 = tpu.dynamic_rotate %12 by %c96_i32_11 dim 1 : vector<1x128xf32>, i32 -> vector<1x128xf32>
    %26 = arith.addf %24, %25 : vector<1x128xf32>
    %cst_12 = arith.constant 0.001953125 : f32
    %27 = vector.broadcast %cst_12 : f32 to vector<1x128xf32>
    %28 = arith.mulf %26, %27 : vector<1x128xf32>
    %29 = arith.mulf %20, %20 : vector<1x128xf32>
    %30 = arith.subf %28, %29 : vector<1x128xf32>
    %cst_13 = arith.constant 0.000000e+00 : f32
    %31 = vector.broadcast %cst_13 : f32 to vector<1x128xf32>
    %32 = arith.maximumf %30, %31 : vector<1x128xf32>
    %33 = vector.broadcast %20 : vector<1x128xf32> to vector<128x128xf32>
    %34 = arith.subf %7, %33 : vector<128x128xf32>
    %cst_14 = arith.constant 9.99999974E-6 : f32
    %35 = vector.broadcast %cst_14 : f32 to vector<1x128xf32>
    %36 = arith.addf %32, %35 : vector<1x128xf32>
    %37 = math.rsqrt %36 : vector<1x128xf32>
    %c0_15 = arith.constant 0 : index
    %c0_16 = arith.constant 0 : index
    %38 = vector.load %arg3[%c0_15, %c0_16] : memref<1x128xf32, #tpu.memory_space<vmem>>, vector<1x128xf32>
    %39 = arith.mulf %37, %38 : vector<1x128xf32>
    %40 = vector.broadcast %39 : vector<1x128xf32> to vector<128x128xf32>
    %41 = arith.mulf %34, %40 : vector<128x128xf32>
    %c0_17 = arith.constant 0 : index
    %c0_18 = arith.constant 0 : index
    %42 = vector.load %arg4[%c0_17, %c0_18] : memref<1x128xf32, #tpu.memory_space<vmem>>, vector<1x128xf32>
    %43 = vector.broadcast %42 : vector<1x128xf32> to vector<128x128xf32>
    %44 = arith.addf %41, %43 : vector<128x128xf32>
    %45 = tpu.iota {dimensions = array<i32: 0>} : vector<128x128xi32>
    %c7_i32 = arith.constant 7 : i32
    %46 = vector.broadcast %c7_i32 : i32 to vector<128x128xi32>
    %47 = arith.andi %45, %46 : vector<128x128xi32>
    %c0_i32 = arith.constant 0 : i32
    %48 = vector.broadcast %c0_i32 : i32 to vector<128x128xi32>
    %49 = arith.cmpi ne, %47, %48 : vector<128x128xi32>
    %c63_i32 = arith.constant 63 : i32
    %50 = vector.broadcast %c63_i32 : i32 to vector<128x128xi32>
    %51 = arith.andi %45, %50 : vector<128x128xi32>
    %c8_i32 = arith.constant 8 : i32
    %52 = vector.broadcast %c8_i32 : i32 to vector<128x128xi32>
    %53 = arith.cmpi sge, %51, %52 : vector<128x128xi32>
    %c1_i32 = arith.constant 1 : i32
    %54 = tpu.dynamic_rotate %44 by %c1_i32 dim 0 : vector<128x128xf32>, i32 -> vector<128x128xf32>
    %cst_19 = arith.constant 0.000000e+00 : f32
    %55 = vector.broadcast %cst_19 : f32 to vector<128x128xf32>
    %56 = arith.select %49, %54, %55 : vector<128x128xi1>, vector<128x128xf32>
    %c8_i32_20 = arith.constant 8 : i32
    %57 = tpu.dynamic_rotate %44 by %c8_i32_20 dim 0 : vector<128x128xf32>, i32 -> vector<128x128xf32>
    %cst_21 = arith.constant 0.000000e+00 : f32
    %58 = vector.broadcast %cst_21 : f32 to vector<128x128xf32>
    %59 = arith.select %53, %57, %58 : vector<128x128xi1>, vector<128x128xf32>
    %c8_i32_22 = arith.constant 8 : i32
    %60 = tpu.dynamic_rotate %56 by %c8_i32_22 dim 0 : vector<128x128xf32>, i32 -> vector<128x128xf32>
    %cst_23 = arith.constant 0.000000e+00 : f32
    %61 = vector.broadcast %cst_23 : f32 to vector<128x128xf32>
    %62 = arith.select %53, %60, %61 : vector<128x128xi1>, vector<128x128xf32>
    %63 = arith.truncf %44 : vector<128x128xf32> to vector<128x128xbf16>
    %c0_24 = arith.constant 0 : index
    %c0_25 = arith.constant 0 : index
    %c0_26 = arith.constant 0 : index
    %64 = vector.load %arg5[%c0_24, %c0_25, %c0_26] : memref<4x128x32xbf16, #tpu.memory_space<vmem>>, vector<1x128x32xbf16>
    %65 = vector.shape_cast %64 : vector<1x128x32xbf16> to vector<128x32xbf16>
    %cst_27 = arith.constant dense<0.000000e+00> : vector<128x32xf32>
    %66 = tpu.matmul %63, %65, %cst_27 {dimension_numbers = #tpu.dot_dimension_numbers<[1], [0], [0], [1], [0, 0, 1, 1], [], []>} : vector<128x128xbf16>, vector<128x32xbf16>, vector<128x32xf32> -> vector<128x32xf32>
    %67 = arith.truncf %59 : vector<128x128xf32> to vector<128x128xbf16>
    %c1 = arith.constant 1 : index
    %c0_28 = arith.constant 0 : index
    %c0_29 = arith.constant 0 : index
    %68 = vector.load %arg5[%c1, %c0_28, %c0_29] : memref<4x128x32xbf16, #tpu.memory_space<vmem>>, vector<1x128x32xbf16>
    %69 = vector.shape_cast %68 : vector<1x128x32xbf16> to vector<128x32xbf16>
    %cst_30 = arith.constant dense<0.000000e+00> : vector<128x32xf32>
    %70 = tpu.matmul %67, %69, %cst_30 {dimension_numbers = #tpu.dot_dimension_numbers<[1], [0], [0], [1], [0, 0, 1, 1], [], []>} : vector<128x128xbf16>, vector<128x32xbf16>, vector<128x32xf32> -> vector<128x32xf32>
    %71 = arith.addf %66, %70 : vector<128x32xf32>
    %72 = arith.truncf %56 : vector<128x128xf32> to vector<128x128xbf16>
    %c2 = arith.constant 2 : index
    %c0_31 = arith.constant 0 : index
    %c0_32 = arith.constant 0 : index
    %73 = vector.load %arg5[%c2, %c0_31, %c0_32] : memref<4x128x32xbf16, #tpu.memory_space<vmem>>, vector<1x128x32xbf16>
    %74 = vector.shape_cast %73 : vector<1x128x32xbf16> to vector<128x32xbf16>
    %cst_33 = arith.constant dense<0.000000e+00> : vector<128x32xf32>
    %75 = tpu.matmul %72, %74, %cst_33 {dimension_numbers = #tpu.dot_dimension_numbers<[1], [0], [0], [1], [0, 0, 1, 1], [], []>} : vector<128x128xbf16>, vector<128x32xbf16>, vector<128x32xf32> -> vector<128x32xf32>
    %76 = arith.addf %71, %75 : vector<128x32xf32>
    %77 = arith.truncf %62 : vector<128x128xf32> to vector<128x128xbf16>
    %c3 = arith.constant 3 : index
    %c0_34 = arith.constant 0 : index
    %c0_35 = arith.constant 0 : index
    %78 = vector.load %arg5[%c3, %c0_34, %c0_35] : memref<4x128x32xbf16, #tpu.memory_space<vmem>>, vector<1x128x32xbf16>
    %79 = vector.shape_cast %78 : vector<1x128x32xbf16> to vector<128x32xbf16>
    %cst_36 = arith.constant dense<0.000000e+00> : vector<128x32xf32>
    %80 = tpu.matmul %77, %79, %cst_36 {dimension_numbers = #tpu.dot_dimension_numbers<[1], [0], [0], [1], [0, 0, 1, 1], [], []>} : vector<128x128xbf16>, vector<128x32xbf16>, vector<128x32xf32> -> vector<128x32xf32>
    %81 = arith.addf %76, %80 : vector<128x32xf32>
    %c0_37 = arith.constant 0 : index
    %c0_38 = arith.constant 0 : index
    %82 = vector.load %arg6[%c0_37, %c0_38] : memref<1x32xf32, #tpu.memory_space<vmem>>, vector<1x32xf32>
    %83 = vector.broadcast %82 : vector<1x32xf32> to vector<128x32xf32>
    %84 = arith.addf %81, %83 : vector<128x32xf32>
    %c0_39 = arith.constant 0 : index
    %c0_40 = arith.constant 0 : index
    %85 = vector.load %arg7[%c0_39, %c0_40] : memref<1x32xf32, #tpu.memory_space<vmem>>, vector<1x32xf32>
    %c0_41 = arith.constant 0 : index
    %c0_42 = arith.constant 0 : index
    %86 = vector.load %arg8[%c0_41, %c0_42] : memref<1x32xf32, #tpu.memory_space<vmem>>, vector<1x32xf32>
    %cst_43 = arith.constant 0.000000e+00 : f32
    %87 = vector.broadcast %cst_43 : f32 to vector<128x32xf32>
    %88 = arith.maximumf %84, %87 : vector<128x32xf32>
    %cst_44 = arith.constant dense<0.000000e+00> : vector<32xf32>
    %89 = vector.multi_reduction <add>, %88, %cst_44 [0] : vector<128x32xf32> to vector<32xf32>
    %90 = vector.shape_cast %89 : vector<32xf32> to vector<1x32xf32>
    %cst_45 = arith.constant 7.812500e-03 : f32
    %91 = vector.broadcast %cst_45 : f32 to vector<1x32xf32>
    %92 = arith.mulf %90, %91 : vector<1x32xf32>
    %93 = arith.mulf %88, %88 : vector<128x32xf32>
    %cst_46 = arith.constant dense<0.000000e+00> : vector<32xf32>
    %94 = vector.multi_reduction <add>, %93, %cst_46 [0] : vector<128x32xf32> to vector<32xf32>
    %95 = vector.shape_cast %94 : vector<32xf32> to vector<1x32xf32>
    %cst_47 = arith.constant 7.812500e-03 : f32
    %96 = vector.broadcast %cst_47 : f32 to vector<1x32xf32>
    %97 = arith.mulf %95, %96 : vector<1x32xf32>
    %98 = arith.mulf %92, %92 : vector<1x32xf32>
    %99 = arith.subf %97, %98 : vector<1x32xf32>
    %cst_48 = arith.constant 0.000000e+00 : f32
    %100 = vector.broadcast %cst_48 : f32 to vector<1x32xf32>
    %101 = arith.maximumf %99, %100 : vector<1x32xf32>
    %102 = vector.broadcast %92 : vector<1x32xf32> to vector<128x32xf32>
    %103 = arith.subf %88, %102 : vector<128x32xf32>
    %cst_49 = arith.constant 9.99999974E-6 : f32
    %104 = vector.broadcast %cst_49 : f32 to vector<1x32xf32>
    %105 = arith.addf %101, %104 : vector<1x32xf32>
    %106 = math.rsqrt %105 : vector<1x32xf32>
    %107 = arith.mulf %106, %85 : vector<1x32xf32>
    %108 = vector.broadcast %107 : vector<1x32xf32> to vector<128x32xf32>
    %109 = arith.mulf %103, %108 : vector<128x32xf32>
    %110 = vector.broadcast %86 : vector<1x32xf32> to vector<128x32xf32>
    %111 = arith.addf %109, %110 : vector<128x32xf32>
    %c0_50 = arith.constant 0 : index
    %c0_51 = arith.constant 0 : index
    %112 = vector.load %arg9[%c0_50, %c0_51] : memref<128x32xf32, #tpu.memory_space<vmem>>, vector<128x32xf32>
    tpu.vector_store %arg9[%c0_50, %c0_51], %111 {strides = array<i32>} : memref<128x32xf32, #tpu.memory_space<vmem>>, vector<128x32xf32>,
    return
  }
}

module attributes {stable_mosaic.version = 11 : i64} {
  func.func @_fc_kernel(%arg0: memref<2x2048xbf16, #tpu.memory_space<vmem>>, %arg1: memref<2048x64xbf16, #tpu.memory_space<vmem>>, %arg2: memref<1x64xf32, #tpu.memory_space<vmem>>, %arg3: memref<1x64xf32, #tpu.memory_space<vmem>>, %arg4: memref<1x64xf32, #tpu.memory_space<vmem>>, %arg5: memref<64x64xbf16, #tpu.memory_space<vmem>>, %arg6: memref<1x64xf32, #tpu.memory_space<vmem>>, %arg7: memref<2x64xf32, #tpu.memory_space<vmem>>) attributes {dimension_semantics = [], scalar_prefetch = 0 : i64, scratch_operands = 0 : i64, tpu.core_type = #tpu.core_type<tc>} {
    %c0 = arith.constant 0 : index
    %c0_0 = arith.constant 0 : index
    %0 = vector.load %arg0[%c0, %c0_0] : memref<2x2048xbf16, #tpu.memory_space<vmem>>, vector<2x2048xbf16>
    %c0_1 = arith.constant 0 : index
    %c0_2 = arith.constant 0 : index
    %1 = vector.load %arg1[%c0_1, %c0_2] : memref<2048x64xbf16, #tpu.memory_space<vmem>>, vector<2048x64xbf16>
    %cst = arith.constant dense<0.000000e+00> : vector<2x64xf32>
    %2 = tpu.matmul %0, %1, %cst {dimension_numbers = #tpu.dot_dimension_numbers<[1], [0], [0], [1], [0, 0, 1, 1], [], []>} : vector<2x2048xbf16>, vector<2048x64xbf16>, vector<2x64xf32> -> vector<2x64xf32>
    %c0_3 = arith.constant 0 : index
    %c0_4 = arith.constant 0 : index
    %3 = vector.load %arg2[%c0_3, %c0_4] : memref<1x64xf32, #tpu.memory_space<vmem>>, vector<1x64xf32>
    %4 = vector.broadcast %3 : vector<1x64xf32> to vector<2x64xf32>
    %5 = arith.addf %2, %4 : vector<2x64xf32>
    %c0_5 = arith.constant 0 : index
    %c0_6 = arith.constant 0 : index
    %6 = vector.load %arg3[%c0_5, %c0_6] : memref<1x64xf32, #tpu.memory_space<vmem>>, vector<1x64xf32>
    %c0_7 = arith.constant 0 : index
    %c0_8 = arith.constant 0 : index
    %7 = vector.load %arg4[%c0_7, %c0_8] : memref<1x64xf32, #tpu.memory_space<vmem>>, vector<1x64xf32>
    %cst_9 = arith.constant 0.000000e+00 : f32
    %8 = vector.broadcast %cst_9 : f32 to vector<2x64xf32>
    %9 = arith.maximumf %5, %8 : vector<2x64xf32>
    %cst_10 = arith.constant dense<0.000000e+00> : vector<64xf32>
    %10 = vector.multi_reduction <add>, %9, %cst_10 [0] : vector<2x64xf32> to vector<64xf32>
    %11 = vector.shape_cast %10 : vector<64xf32> to vector<1x64xf32>
    %cst_11 = arith.constant 5.000000e-01 : f32
    %12 = vector.broadcast %cst_11 : f32 to vector<1x64xf32>
    %13 = arith.mulf %11, %12 : vector<1x64xf32>
    %14 = arith.mulf %9, %9 : vector<2x64xf32>
    %cst_12 = arith.constant dense<0.000000e+00> : vector<64xf32>
    %15 = vector.multi_reduction <add>, %14, %cst_12 [0] : vector<2x64xf32> to vector<64xf32>
    %16 = vector.shape_cast %15 : vector<64xf32> to vector<1x64xf32>
    %cst_13 = arith.constant 5.000000e-01 : f32
    %17 = vector.broadcast %cst_13 : f32 to vector<1x64xf32>
    %18 = arith.mulf %16, %17 : vector<1x64xf32>
    %19 = arith.mulf %13, %13 : vector<1x64xf32>
    %20 = arith.subf %18, %19 : vector<1x64xf32>
    %cst_14 = arith.constant 0.000000e+00 : f32
    %21 = vector.broadcast %cst_14 : f32 to vector<1x64xf32>
    %22 = arith.maximumf %20, %21 : vector<1x64xf32>
    %23 = vector.broadcast %13 : vector<1x64xf32> to vector<2x64xf32>
    %24 = arith.subf %9, %23 : vector<2x64xf32>
    %cst_15 = arith.constant 9.99999974E-6 : f32
    %25 = vector.broadcast %cst_15 : f32 to vector<1x64xf32>
    %26 = arith.addf %22, %25 : vector<1x64xf32>
    %27 = math.rsqrt %26 : vector<1x64xf32>
    %28 = arith.mulf %27, %6 : vector<1x64xf32>
    %29 = vector.broadcast %28 : vector<1x64xf32> to vector<2x64xf32>
    %30 = arith.mulf %24, %29 : vector<2x64xf32>
    %31 = vector.broadcast %7 : vector<1x64xf32> to vector<2x64xf32>
    %32 = arith.addf %30, %31 : vector<2x64xf32>
    %33 = arith.truncf %32 : vector<2x64xf32> to vector<2x64xbf16>
    %c0_16 = arith.constant 0 : index
    %c0_17 = arith.constant 0 : index
    %34 = vector.load %arg5[%c0_16, %c0_17] : memref<64x64xbf16, #tpu.memory_space<vmem>>, vector<64x64xbf16>
    %cst_18 = arith.constant dense<0.000000e+00> : vector<2x64xf32>
    %35 = tpu.matmul %33, %34, %cst_18 {dimension_numbers = #tpu.dot_dimension_numbers<[1], [0], [0], [1], [0, 0, 1, 1], [], []>} : vector<2x64xbf16>, vector<64x64xbf16>, vector<2x64xf32> -> vector<2x64xf32>
    %c0_19 = arith.constant 0 : index
    %c0_20 = arith.constant 0 : index
    %36 = vector.load %arg6[%c0_19, %c0_20] : memref<1x64xf32, #tpu.memory_space<vmem>>, vector<1x64xf32>
    %37 = vector.broadcast %36 : vector<1x64xf32> to vector<2x64xf32>
    %38 = arith.addf %35, %37 : vector<2x64xf32>
    %c0_21 = arith.constant 0 : index
    %c0_22 = arith.constant 0 : index
    %39 = vector.load %arg7[%c0_21, %c0_22] : memref<2x64xf32, #tpu.memory_space<vmem>>, vector<2x64xf32>
    tpu.vector_store %arg7[%c0_21, %c0_22], %38 {strides = array<i32>} : memref<2x64xf32, #tpu.memory_space<vmem>>, vector<2x64xf32>,
    return
  }
}

</mosaic_0001>

<llo_original>
// kernel: encoder_forward.2
$region0: #{encoder_forward.2}
  #allocation0 [shape = 'u32[]', space=smem, size = 0x4, offset = 0x4, fixed_abs, tag = 'smem constant byte address 0x4 - core index']
  #allocation1 [shape = 'u32[144,128]{1,0:T(1,128)}', space=vmem, size = 0x12000, scoped, tag = 'internal scratch']
  %s0 = inlined_call_operand.vmem [shape: bf16[128,128], index: 0, kind: input, shape index: {}]
  %s1 = inlined_call_operand.vmem [shape: bf16[128,128], index: 1, kind: input, shape index: {}]
  %s2 = inlined_call_operand.vmem [shape: f32[1,128], index: 2, kind: input, shape index: {}]
  %s3 = inlined_call_operand.vmem [shape: f32[1,128], index: 3, kind: input, shape index: {}]
  %s4 = inlined_call_operand.vmem [shape: f32[1,128], index: 4, kind: input, shape index: {}]
  %s5 = inlined_call_operand.vmem [shape: bf16[4,128,32], index: 5, kind: input, shape index: {}]
  %s6 = inlined_call_operand.vmem [shape: f32[1,32], index: 6, kind: input, shape index: {}]
  %s7 = inlined_call_operand.vmem [shape: f32[1,32], index: 7, kind: input, shape index: {}]
  %s8 = inlined_call_operand.vmem [shape: f32[1,32], index: 8, kind: input, shape index: {}]
  %s9 = inlined_call_operand.vmem [shape: f32[128,32], index: 9, kind: output, shape index: {}]
  %s10 = sld [smem:[#allocation0]]
  $region46: #{encoder_forward.2} parent=0
    _
  %s12 = ssub.s32 1, %s10
  %s13 = scalar_select 0, %s12, %s10
  // Predicated region
  $region2: #{encoder_forward.2} parent=0 // pred_check
    _
  $region3: #{encoder_forward.2} parent=0 // pred_check_branch
    %15 = sbr.rel (0) target = $region5
  $region4: #{encoder_forward.2} parent=0 // pred_region
    _
  $region5: #{encoder_forward.2} parent=0 // pred_fallthru
    _
  // Predicated region
  $region6: #{encoder_forward.2} parent=0 // pred_check
    _
  $region7: #{encoder_forward.2} parent=0 // pred_check_branch
    %17 = sbr.rel (0) target = $region9
  $region8: #{encoder_forward.2} parent=0 // pred_region
    _
  $region9: #{encoder_forward.2} parent=0 // pred_fallthru
    _
  // Predicated region
  $region10: #{encoder_forward.2} parent=0 // pred_check
    _
  $region11: #{encoder_forward.2} parent=0 // pred_check_branch
    %19 = sbr.rel (0) target = $region13
  $region12: #{encoder_forward.2} parent=0 // pred_region
    _
  $region13: #{encoder_forward.2} parent=0 // pred_fallthru
    _
  // Predicated region
  $region14: #{encoder_forward.2} parent=0 // pred_check
    _
  $region15: #{encoder_forward.2} parent=0 // pred_check_branch
    %21 = sbr.rel (0) target = $region17
  $region16: #{encoder_forward.2} parent=0 // pred_region
    _
  $region17: #{encoder_forward.2} parent=0 // pred_fallthru
    _
  // Predicated region
  $region18: #{encoder_forward.2} parent=0 // pred_check
    _
  $region19: #{encoder_forward.2} parent=0 // pred_check_branch
    %23 = sbr.rel (0) target = $region21
  $region20: #{encoder_forward.2} parent=0 // pred_region
    _
  $region21: #{encoder_forward.2} parent=0 // pred_fallthru
    _
  // Predicated region
  $region22: #{encoder_forward.2} parent=0 // pred_check
    _
  $region23: #{encoder_forward.2} parent=0 // pred_check_branch
    %25 = sbr.rel (0) target = $region25
  $region24: #{encoder_forward.2} parent=0 // pred_region
    _
  $region25: #{encoder_forward.2} parent=0 // pred_fallthru
    _
  // Predicated region
  $region26: #{encoder_forward.2} parent=0 // pred_check
    _
  $region27: #{encoder_forward.2} parent=0 // pred_check_branch
    %27 = sbr.rel (0) target = $region29
  $region28: #{encoder_forward.2} parent=0 // pred_region
    _
  $region29: #{encoder_forward.2} parent=0 // pred_fallthru
    _
  // Predicated region
  $region30: #{encoder_forward.2} parent=0 // pred_check
    _
  $region31: #{encoder_forward.2} parent=0 // pred_check_branch
    %29 = sbr.rel (0) target = $region33
  $region32: #{encoder_forward.2} parent=0 // pred_region
    _
  $region33: #{encoder_forward.2} parent=0 // pred_fallthru
    _
  // Predicated region
  $region34: #{encoder_forward.2} parent=0 // pred_check
    _
  $region35: #{encoder_forward.2} parent=0 // pred_check_branch
    %31 = sbr.rel (0) target = $region37
  $region36: #{encoder_forward.2} parent=0 // pred_region
    _
  $region37: #{encoder_forward.2} parent=0 // pred_fallthru
    _
  %v33 = vld [vmem:[%s0] sm:$0xf]
  %v34 = vld [vmem:[%s0 + $0x4] sm:$0xf]
  %v35 = vld [vmem:[%s0 + $0x8] sm:$0xf]
  %v36 = vld [vmem:[%s0 + $0xc] sm:$0xf]
  %v37 = vld [vmem:[%s0 + $0x10] sm:$0xf]
  %v38 = vld [vmem:[%s0 + $0x14] sm:$0xf]
  %v39 = vld [vmem:[%s0 + $0x18] sm:$0xf]
  %v40 = vld [vmem:[%s0 + $0x1c] sm:$0xf]
  %v41 = vld [vmem:[%s0 + $0x20] sm:$0xf]
  %v42 = vld [vmem:[%s0 + $0x24] sm:$0xf]
  %v43 = vld [vmem:[%s0 + $0x28] sm:$0xf]
  %v44 = vld [vmem:[%s0 + $0x2c] sm:$0xf]
  %v45 = vld [vmem:[%s0 + $0x30] sm:$0xf]
  %v46 = vld [vmem:[%s0 + $0x34] sm:$0xf]
  %v47 = vld [vmem:[%s0 + $0x38] sm:$0xf]
  %v48 = vld [vmem:[%s0 + $0x3c] sm:$0xf]
  %v49 = vld [vmem:[%s1] sm:$0xf]
  %v50 = vld [vmem:[%s1 + $0x4] sm:$0xf]
  %v51 = vld [vmem:[%s1 + $0x8] sm:$0xf]
  %v52 = vld [vmem:[%s1 + $0xc] sm:$0xf]
  %v53 = vld [vmem:[%s1 + $0x10] sm:$0xf]
  %v54 = vld [vmem:[%s1 + $0x14] sm:$0xf]
  %v55 = vld [vmem:[%s1 + $0x18] sm:$0xf]
  %v56 = vld [vmem:[%s1 + $0x1c] sm:$0xf]
  %v57 = vld [vmem:[%s1 + $0x20] sm:$0xf]
  %v58 = vld [vmem:[%s1 + $0x24] sm:$0xf]
  %v59 = vld [vmem:[%s1 + $0x28] sm:$0xf]
  %v60 = vld [vmem:[%s1 + $0x2c] sm:$0xf]
  %v61 = vld [vmem:[%s1 + $0x30] sm:$0xf]
  %v62 = vld [vmem:[%s1 + $0x34] sm:$0xf]
  %v63 = vld [vmem:[%s1 + $0x38] sm:$0xf]
  %v64 = vld [vmem:[%s1 + $0x3c] sm:$0xf]
  %v65 = vld [vmem:[%s2] sm:$0x1]
  %v67 = vlaneseq
  %v68 = vshrl.u32 %v67, 7
  %v69 = vsub.s32 0, %v68
  %v70 = vrot.slane %v65, %v69
  %v88 = vunpack.c.l.b16 %v33
  %v89 = vunpack.c.l.b16 %v34
  %v90 = vunpack.c.l.b16 %v35
  %v91 = vunpack.c.l.b16 %v36
  %v92 = vunpack.c.l.b16 %v37
  %v93 = vunpack.c.l.b16 %v38
  %v94 = vunpack.c.l.b16 %v39
  %v95 = vunpack.c.l.b16 %v40
  %v96 = vunpack.c.l.b16 %v41
  %v97 = vunpack.c.l.b16 %v42
  %v98 = vunpack.c.l.b16 %v43
  %v99 = vunpack.c.l.b16 %v44
  %v100 = vunpack.c.l.b16 %v45
  %v101 = vunpack.c.l.b16 %v46
  %v102 = vunpack.c.l.b16 %v47
  %v103 = vunpack.c.l.b16 %v48
  %v104 = vpack.c.b16 %v89, %v88
  %v105 = vpack.c.b16 %v91, %v90
  %v106 = vpack.c.b16 %v93, %v92
  %v107 = vpack.c.b16 %v95, %v94
  %v108 = vpack.c.b16 %v97, %v96
  %v109 = vpack.c.b16 %v99, %v98
  %v110 = vpack.c.b16 %v101, %v100
  %v111 = vpack.c.b16 %v103, %v102
  %v136 = vunpack.c.l.b16 %v49
  %v137 = vunpack.c.l.b16 %v50
  %v138 = vunpack.c.l.b16 %v51
  %v139 = vunpack.c.l.b16 %v52
  %v140 = vunpack.c.l.b16 %v53
  %v141 = vunpack.c.l.b16 %v54
  %v142 = vunpack.c.l.b16 %v55
  %v143 = vunpack.c.l.b16 %v56
  %v144 = vunpack.c.l.b16 %v57
  %v145 = vunpack.c.l.b16 %v58
  %v146 = vunpack.c.l.b16 %v59
  %v147 = vunpack.c.l.b16 %v60
  %v148 = vunpack.c.l.b16 %v61
  %v149 = vunpack.c.l.b16 %v62
  %v150 = vunpack.c.l.b16 %v63
  %v151 = vunpack.c.l.b16 %v64
  %v152 = vpack.c.b16 %v137, %v136
  %v153 = vpack.c.b16 %v139, %v138
  %v154 = vpack.c.b16 %v141, %v140
  %v155 = vpack.c.b16 %v143, %v142
  %v156 = vpack.c.b16 %v145, %v144
  %v157 = vpack.c.b16 %v147, %v146
  %v158 = vpack.c.b16 %v149, %v148
  %v159 = vpack.c.b16 %v151, %v150
  %168 = vmatprep.subr.bf16.mxu0 0
  %169 = vmatpush1.bf16.msra.mxu0 %v152
  %170 = vmatprep.subr.bf16.mxu0 0
  %171 = vmatpush1.bf16.msra.mxu0 %v153
  %172 = vmatprep.subr.bf16.mxu0 0
  %173 = vmatpush1.bf16.msra.mxu0 %v154
  %174 = vmatprep.subr.bf16.mxu0 0
  %175 = vmatpush1.bf16.msra.mxu0 %v155
  %176 = vmatprep.subr.bf16.mxu0 0
  %177 = vmatpush1.bf16.msra.mxu0 %v156
  %178 = vmatprep.subr.bf16.mxu0 0
  %179 = vmatpush1.bf16.msra.mxu0 %v157
  %180 = vmatprep.subr.bf16.mxu0 0
  %181 = vmatpush1.bf16.msra.mxu0 %v158
  %182 = vmatprep.subr.bf16.mxu0 0
  %183 = vmatpush1.bf16.msra.mxu0 %v159
  %184 = vmatprep.subr.bf16.mxu0 0
  %185 = vmatpush1.bf16.msra.mxu0 0
  %186 = vmatprep.subr.bf16.mxu0 0
  %187 = vmatpush1.bf16.msra.mxu0 0
  %188 = vmatprep.subr.bf16.mxu0 0
  %189 = vmatpush1.bf16.msra.mxu0 0
  %190 = vmatprep.subr.bf16.mxu0 0
  %191 = vmatpush1.bf16.msra.mxu0 0
  %192 = vmatprep.subr.bf16.mxu0 0
  %193 = vmatpush1.bf16.msra.mxu0 0
  %194 = vmatprep.subr.bf16.mxu0 0
  %195 = vmatpush1.bf16.msra.mxu0 0
  %196 = vmatprep.subr.bf16.mxu0 0
  %197 = vmatpush1.bf16.msra.mxu0 0
  %198 = vmatprep.subr.bf16.mxu0 0
  %199 = vmatpush1.bf16.msra.mxu0 0
  %200 = vmatprep.mubr.bf16.mxu0 0
  %201 = vmatmul.mubr.bf16.gmra.mrb[0].mxu0 %v104
  %v202 = vpop.f32.mrb[0].mxu0
  %v203 = vadd.f32 %v70, %v202
  %v204 = vpop.f32.mrb[0].mxu0
  %v205 = vpop.f32.mrb[0].mxu0
  %v206 = vadd.f32 %v70, %v205
  %v207 = vpop.f32.mrb[0].mxu0
  %208 = vmatprep.mubr.bf16.mxu0 0
  %209 = vmatmul.mubr.bf16.gmra.mrb[0].mxu0 %v105
  %v210 = vpop.f32.mrb[0].mxu0
  %v211 = vadd.f32 %v70, %v210
  %v212 = vpop.f32.mrb[0].mxu0
  %v213 = vpop.f32.mrb[0].mxu0
  %v214 = vadd.f32 %v70, %v213
  %v215 = vpop.f32.mrb[0].mxu0
  %216 = vmatprep.mubr.bf16.mxu0 0
  %217 = vmatmul.mubr.bf16.gmra.mrb[0].mxu0 %v106
  %v218 = vpop.f32.mrb[0].mxu0
  %v219 = vadd.f32 %v70, %v218
  %v220 = vpop.f32.mrb[0].mxu0
  %v221 = vpop.f32.mrb[0].mxu0
  %v222 = vadd.f32 %v70, %v221
  %v223 = vpop.f32.mrb[0].mxu0
  %224 = vmatprep.mubr.bf16.mxu0 0
  %225 = vmatmul.mubr.bf16.gmra.mrb[0].mxu0 %v107
  %v226 = vpop.f32.mrb[0].mxu0
  %v227 = vadd.f32 %v70, %v226
  %v228 = vpop.f32.mrb[0].mxu0
  %v229 = vpop.f32.mrb[0].mxu0
  %v230 = vadd.f32 %v70, %v229
  %v231 = vpop.f32.mrb[0].mxu0
  %232 = vmatprep.mubr.bf16.mxu0 0
  %233 = vmatmul.mubr.bf16.gmra.mrb[0].mxu0 %v108
  %v234 = vpop.f32.mrb[0].mxu0
  %v235 = vadd.f32 %v70, %v234
  %v236 = vpop.f32.mrb[0].mxu0
  %v237 = vpop.f32.mrb[0].mxu0
  %v238 = vadd.f32 %v70, %v237
  %v239 = vpop.f32.mrb[0].mxu0
  %240 = vmatprep.mubr.bf16.mxu0 0
  %241 = vmatmul.mubr.bf16.gmra.mrb[0].mxu0 %v109
  %v242 = vpop.f32.mrb[0].mxu0
  %v243 = vadd.f32 %v70, %v242
  %v244 = vpop.f32.mrb[0].mxu0
  %v245 = vpop.f32.mrb[0].mxu0
  %v246 = vadd.f32 %v70, %v245
  %v247 = vpop.f32.mrb[0].mxu0
  %248 = vmatprep.mubr.bf16.mxu0 0
  %249 = vmatmul.mubr.bf16.gmra.mrb[0].mxu0 %v110
  %v250 = vpop.f32.mrb[0].mxu0
  %v251 = vadd.f32 %v70, %v250
  %v252 = vpop.f32.mrb[0].mxu0
  %v253 = vpop.f32.mrb[0].mxu0
  %v254 = vadd.f32 %v70, %v253
  %v255 = vpop.f32.mrb[0].mxu0
  %256 = vmatprep.mubr.bf16.mxu0 0
  %257 = vmatmul.mubr.bf16.gmra.mrb[0].mxu0 %v111
  %v258 = vpop.f32.mrb[0].mxu0
  %v259 = vadd.f32 %v70, %v258
  %v260 = vpop.f32.mrb[0].mxu0
  %v261 = vpop.f32.mrb[0].mxu0
  %v262 = vadd.f32 %v70, %v261
  %v263 = vpop.f32.mrb[0].mxu0
  %264 = vdwg.mxu0
  %v265 = vmax.f32 %v203, 0.0
  %v266 = vmax.f32 %v206, 0.0
  %v267 = vmax.f32 %v211, 0.0
  %v268 = vmax.f32 %v214, 0.0
  %v269 = vmax.f32 %v219, 0.0
  %v270 = vmax.f32 %v222, 0.0
  %v271 = vmax.f32 %v227, 0.0
  %v272 = vmax.f32 %v230, 0.0
  %v273 = vmax.f32 %v235, 0.0
  %v274 = vmax.f32 %v238, 0.0
  %v275 = vmax.f32 %v243, 0.0
  %v276 = vmax.f32 %v246, 0.0
  %v277 = vmax.f32 %v251, 0.0
  %v278 = vmax.f32 %v254, 0.0
  %v279 = vmax.f32 %v259, 0.0
  %v280 = vmax.f32 %v262, 0.0
  %v281 = vadd.f32 %v265, %v266
  %v282 = vadd.f32 %v281, %v267
  %v283 = vadd.f32 %v282, %v268
  %v284 = vadd.f32 %v283, %v269
  %v285 = vadd.f32 %v284, %v270
  %v286 = vadd.f32 %v285, %v271
  %v287 = vadd.f32 %v286, %v272
  %v288 = vadd.f32 %v287, %v273
  %v289 = vadd.f32 %v288, %v274
  %v290 = vadd.f32 %v289, %v275
  %v291 = vadd.f32 %v290, %v276
  %v292 = vadd.f32 %v291, %v277
  %v293 = vadd.f32 %v292, %v278
  %v294 = vadd.f32 %v293, %v279
  %v295 = vadd.f32 %v294, %v280
  %v296 = vrot.slane %v295, 4
  %v297 = vadd.f32 %v295, %v296
  %v298 = vrot.slane %v297, 2
  %v299 = vadd.f32 %v297, %v298
  %v300 = vrot.slane %v299, 1
  %v301 = vadd.f32 %v299, %v300
  %v302 = vmul.f32 %v265, %v265
  %v303 = vmul.f32 %v266, %v266
  %v304 = vmul.f32 %v267, %v267
  %v305 = vmul.f32 %v268, %v268
  %v306 = vmul.f32 %v269, %v269
  %v307 = vmul.f32 %v270, %v270
  %v308 = vmul.f32 %v271, %v271
  %v309 = vmul.f32 %v272, %v272
  %v310 = vmul.f32 %v273, %v273
  %v311 = vmul.f32 %v274, %v274
  %v312 = vmul.f32 %v275, %v275
  %v313 = vmul.f32 %v276, %v276
  %v314 = vmul.f32 %v277, %v277
  %v315 = vmul.f32 %v278, %v278
  %v316 = vmul.f32 %v279, %v279
  %v317 = vmul.f32 %v280, %v280
  %v318 = vadd.f32 %v302, %v303
  %v319 = vadd.f32 %v318, %v304
  %v320 = vadd.f32 %v319, %v305
  %v321 = vadd.f32 %v320, %v306
  %v322 = vadd.f32 %v321, %v307
  %v323 = vadd.f32 %v322, %v308
  %v324 = vadd.f32 %v323, %v309
  %v325 = vadd.f32 %v324, %v310
  %v326 = vadd.f32 %v325, %v311
  %v327 = vadd.f32 %v326, %v312
  %v328 = vadd.f32 %v327, %v313
  %v329 = vadd.f32 %v328, %v314
  %v330 = vadd.f32 %v329, %v315
  %v331 = vadd.f32 %v330, %v316
  %v332 = vadd.f32 %v331, %v317
  %v333 = vrot.slane %v332, 4
  %v334 = vadd.f32 %v332, %v333
  %v335 = vrot.slane %v334, 2
  %v336 = vadd.f32 %v334, %v335
  %v337 = vrot.slane %v336, 1
  %v338 = vadd.f32 %v336, %v337
  %339 = vrot.lane.b32.xlu0 %v301, 32
  %v340 = vpop.permute.xlu0 %339
  %v341 = vadd.f32 %v301, %v340
  %342 = vrot.lane.b32.xlu0 %v301, 64
  %v343 = vpop.permute.xlu0 %342
  %v344 = vadd.f32 %v341, %v343
  %345 = vrot.lane.b32.xlu0 %v301, 96
  %v346 = vpop.permute.xlu0 %345
  %v347 = vadd.f32 %v344, %v346
  %v348 = vmul.f32 %v347, 0.001953125
  %349 = vrot.lane.b32.xlu0 %v338, 32
  %v350 = vpop.permute.xlu0 %349
  %v351 = vadd.f32 %v338, %v350
  %352 = vrot.lane.b32.xlu0 %v338, 64
  %v353 = vpop.permute.xlu0 %352
  %v354 = vadd.f32 %v351, %v353
  %355 = vrot.lane.b32.xlu0 %v338, 96
  %v356 = vpop.permute.xlu0 %355
  %v357 = vadd.f32 %v354, %v356
  %v358 = vmul.f32 %v357, 0.001953125
  %v359 = vmul.f32 %v348, %v348
  %v360 = vsub.f32 %v358, %v359
  %v361 = vmax.f32 %v360, 0.0
  %v362 = vlaneseq
  %v363 = vshrl.u32 %v362, 7
  %v364 = vsub.s32 0, %v363
  %v365 = vrot.slane %v348, %v364
  %v366 = vsub.f32 %v265, %v365
  %v367 = vsub.f32 %v266, %v365
  %v368 = vsub.f32 %v267, %v365
  %v369 = vsub.f32 %v268, %v365
  %v370 = vsub.f32 %v269, %v365
  %v371 = vsub.f32 %v270, %v365
  %v372 = vsub.f32 %v271, %v365
  %v373 = vsub.f32 %v272, %v365
  %v374 = vsub.f32 %v273, %v365
  %v375 = vsub.f32 %v274, %v365
  %v376 = vsub.f32 %v275, %v365
  %v377 = vsub.f32 %v276, %v365
  %v378 = vsub.f32 %v277, %v365
  %v379 = vsub.f32 %v278, %v365
  %v380 = vsub.f32 %v279, %v365
  %v381 = vsub.f32 %v280, %v365
  %v382 = vadd.f32 %v361, 1e-05
  %v383 = vrsqrt.pop %v382
  %v384 = vld [vmem:[%s3] sm:$0x1]
  %v385 = vmul.f32 %v383, %v384
  %v386 = vlaneseq
  %v387 = vshrl.u32 %v386, 7
  %v388 = vsub.s32 0, %v387
  %v389 = vrot.slane %v385, %v388
  %v390 = vmul.f32 %v366, %v389
  %v391 = vmul.f32 %v367, %v389
  %v392 = vmul.f32 %v368, %v389
  %v393 = vmul.f32 %v369, %v389
  %v394 = vmul.f32 %v370, %v389
  %v395 = vmul.f32 %v371, %v389
  %v396 = vmul.f32 %v372, %v389
  %v397 = vmul.f32 %v373, %v389
  %v398 = vmul.f32 %v374, %v389
  %v399 = vmul.f32 %v375, %v389
  %v400 = vmul.f32 %v376, %v389
  %v401 = vmul.f32 %v377, %v389
  %v402 = vmul.f32 %v378, %v389
  %v403 = vmul.f32 %v379, %v389
  %v404 = vmul.f32 %v380, %v389
  %v405 = vmul.f32 %v381, %v389
  %v406 = vld [vmem:[%s4] sm:$0x1]
  %v408 = vlaneseq
  %v409 = vshrl.u32 %v408, 7
  %v410 = vsub.s32 0, %v409
  %v411 = vrot.slane %v406, %v410
  %v413 = vadd.f32 %v390, %v411
  %v414 = vadd.f32 %v391, %v411
  %v415 = vadd.f32 %v392, %v411
  %v416 = vadd.f32 %v393, %v411
  %v417 = vadd.f32 %v394, %v411
  %v418 = vadd.f32 %v395, %v411
  %v419 = vadd.f32 %v396, %v411
  %v420 = vadd.f32 %v397, %v411
  %v421 = vadd.f32 %v398, %v411
  %v422 = vadd.f32 %v399, %v411
  %v423 = vadd.f32 %v400, %v411
  %v424 = vadd.f32 %v401, %v411
  %v425 = vadd.f32 %v402, %v411
  %v426 = vadd.f32 %v403, %v411
  %v427 = vadd.f32 %v404, %v411
  %v428 = vadd.f32 %v405, %v411
  %v429 = vlaneseq
  %v430 = vshrl.u32 %v429, 7
  %v431 = vadd.s32 %v430, 8
  %v432 = vadd.s32 %v430, 16
  %v433 = vadd.s32 %v430, 24
  %v434 = vadd.s32 %v430, 32
  %v435 = vadd.s32 %v430, 40
  %v436 = vadd.s32 %v430, 48
  %v437 = vadd.s32 %v430, 56
  %v438 = vadd.s32 %v430, 64
  %v439 = vadd.s32 %v430, 72
  %v440 = vadd.s32 %v430, 80
  %v441 = vadd.s32 %v430, 88
  %v442 = vadd.s32 %v430, 96
  %v443 = vadd.s32 %v430, 104
  %v444 = vadd.s32 %v430, 112
  %v445 = vadd.s32 %v430, 120
  %v446 = vand.u32 %v430, 7
  %v447 = vand.u32 %v431, 7
  %v448 = vand.u32 %v432, 7
  %v449 = vand.u32 %v433, 7
  %v450 = vand.u32 %v434, 7
  %v451 = vand.u32 %v435, 7
  %v452 = vand.u32 %v436, 7
  %v453 = vand.u32 %v437, 7
  %v454 = vand.u32 %v438, 7
  %v455 = vand.u32 %v439, 7
  %v456 = vand.u32 %v440, 7
  %v457 = vand.u32 %v441, 7
  %v458 = vand.u32 %v442, 7
  %v459 = vand.u32 %v443, 7
  %v460 = vand.u32 %v444, 7
  %v461 = vand.u32 %v445, 7
  %vm462 = vcmp.ne.s32.totalorder %v446, 0
  %vm463 = vcmp.ne.s32.totalorder %v447, 0
  %vm464 = vcmp.ne.s32.totalorder %v448, 0
  %vm465 = vcmp.ne.s32.totalorder %v449, 0
  %vm466 = vcmp.ne.s32.totalorder %v450, 0
  %vm467 = vcmp.ne.s32.totalorder %v451, 0
  %vm468 = vcmp.ne.s32.totalorder %v452, 0
  %vm469 = vcmp.ne.s32.totalorder %v453, 0
  %vm470 = vcmp.ne.s32.totalorder %v454, 0
  %vm471 = vcmp.ne.s32.totalorder %v455, 0
  %vm472 = vcmp.ne.s32.totalorder %v456, 0
  %vm473 = vcmp.ne.s32.totalorder %v457, 0
  %vm474 = vcmp.ne.s32.totalorder %v458, 0
  %vm475 = vcmp.ne.s32.totalorder %v459, 0
  %vm476 = vcmp.ne.s32.totalorder %v460, 0
  %vm477 = vcmp.ne.s32.totalorder %v461, 0
  %v478 = vand.u32 %v430, 63
  %v479 = vand.u32 %v431, 63
  %v480 = vand.u32 %v432, 63
  %v481 = vand.u32 %v433, 63
  %v482 = vand.u32 %v434, 63
  %v483 = vand.u32 %v435, 63
  %v484 = vand.u32 %v436, 63
  %v485 = vand.u32 %v437, 63
  %v486 = vand.u32 %v438, 63
  %v487 = vand.u32 %v439, 63
  %v488 = vand.u32 %v440, 63
  %v489 = vand.u32 %v441, 63
  %v490 = vand.u32 %v442, 63
  %v491 = vand.u32 %v443, 63
  %v492 = vand.u32 %v444, 63
  %v493 = vand.u32 %v445, 63
  %vm494 = vcmp.ge.s32.totalorder %v478, 8
  %vm495 = vcmp.ge.s32.totalorder %v479, 8
  %vm496 = vcmp.ge.s32.totalorder %v480, 8
  %vm497 = vcmp.ge.s32.totalorder %v481, 8
  %vm498 = vcmp.ge.s32.totalorder %v482, 8
  %vm499 = vcmp.ge.s32.totalorder %v483, 8
  %vm500 = vcmp.ge.s32.totalorder %v484, 8
  %vm501 = vcmp.ge.s32.totalorder %v485, 8
  %vm502 = vcmp.ge.s32.totalorder %v486, 8
  %vm503 = vcmp.ge.s32.totalorder %v487, 8
  %vm504 = vcmp.ge.s32.totalorder %v488, 8
  %vm505 = vcmp.ge.s32.totalorder %v489, 8
  %vm506 = vcmp.ge.s32.totalorder %v490, 8
  %vm507 = vcmp.ge.s32.totalorder %v491, 8
  %vm508 = vcmp.ge.s32.totalorder %v492, 8
  %vm509 = vcmp.ge.s32.totalorder %v493, 8
  %v510 = vrot.slane %v413, 7
  %v511 = vrot.slane %v414, 7
  %v512 = vrot.slane %v415, 7
  %v513 = vrot.slane %v416, 7
  %v514 = vrot.slane %v417, 7
  %v515 = vrot.slane %v418, 7
  %v516 = vrot.slane %v419, 7
  %v517 = vrot.slane %v420, 7
  %v518 = vrot.slane %v421, 7
  %v519 = vrot.slane %v422, 7
  %v520 = vrot.slane %v423, 7
  %v521 = vrot.slane %v424, 7
  %v522 = vrot.slane %v425, 7
  %v523 = vrot.slane %v426, 7
  %v524 = vrot.slane %v427, 7
  %v525 = vrot.slane %v428, 7
  %vm526 = vcmp.lt.s32.totalorder %v430, 1
  %v527 = vsel %vm526, %v524, %v525
  %v528 = vsel %vm526, %v523, %v524
  %v529 = vsel %vm526, %v522, %v523
  %v530 = vsel %vm526, %v521, %v522
  %v531 = vsel %vm526, %v520, %v521
  %v532 = vsel %vm526, %v519, %v520
  %v533 = vsel %vm526, %v518, %v519
  %v534 = vsel %vm526, %v517, %v518
  %v535 = vsel %vm526, %v516, %v517
  %v536 = vsel %vm526, %v515, %v516
  %v537 = vsel %vm526, %v514, %v515
  %v538 = vsel %vm526, %v513, %v514
  %v539 = vsel %vm526, %v512, %v513
  %v540 = vsel %vm526, %v511, %v512
  %v541 = vsel %vm526, %v510, %v511
  %v542 = vsel %vm526, %v525, %v510
  %v543 = vsel %vm462, %v542, 0.0
  %v544 = vsel %vm463, %v541, 0.0
  %v545 = vsel %vm464, %v540, 0.0
  %v546 = vsel %vm465, %v539, 0.0
  %v547 = vsel %vm466, %v538, 0.0
  %v548 = vsel %vm467, %v537, 0.0
  %v549 = vsel %vm468, %v536, 0.0
  %v550 = vsel %vm469, %v535, 0.0
  %v551 = vsel %vm470, %v534, 0.0
  %v552 = vsel %vm471, %v533, 0.0
  %v553 = vsel %vm472, %v532, 0.0
  %v554 = vsel %vm473, %v531, 0.0
  %v555 = vsel %vm474, %v530, 0.0
  %v556 = vsel %vm475, %v529, 0.0
  %v557 = vsel %vm476, %v528, 0.0
  %v558 = vsel %vm477, %v527, 0.0
  %v559 = vsel %vm494, %v428, 0.0
  %v560 = vsel %vm495, %v413, 0.0
  %v561 = vsel %vm496, %v414, 0.0
  %v562 = vsel %vm497, %v415, 0.0
  %v563 = vsel %vm498, %v416, 0.0
  %v564 = vsel %vm499, %v417, 0.0
  %v565 = vsel %vm500, %v418, 0.0
  %v566 = vsel %vm501, %v419, 0.0
  %v567 = vsel %vm502, %v420, 0.0
  %v568 = vsel %vm503, %v421, 0.0
  %v569 = vsel %vm504, %v422, 0.0
  %v570 = vsel %vm505, %v423, 0.0
  %v571 = vsel %vm506, %v424, 0.0
  %v572 = vsel %vm507, %v425, 0.0
  %v573 = vsel %vm508, %v426, 0.0
  %v574 = vsel %vm509, %v427, 0.0
  %v575 = vsel %vm494, %v558, 0.0
  %v576 = vsel %vm495, %v543, 0.0
  %v577 = vsel %vm496, %v544, 0.0
  %v578 = vsel %vm497, %v545, 0.0
  %v579 = vsel %vm498, %v546, 0.0
  %v580 = vsel %vm499, %v547, 0.0
  %v581 = vsel %vm500, %v548, 0.0
  %v582 = vsel %vm501, %v549, 0.0
  %v583 = vsel %vm502, %v550, 0.0
  %v584 = vsel %vm503, %v551, 0.0
  %v585 = vsel %vm504, %v552, 0.0
  %v586 = vsel %vm505, %v553, 0.0
  %v587 = vsel %vm506, %v554, 0.0
  %v588 = vsel %vm507, %v555, 0.0
  %v589 = vsel %vm508, %v556, 0.0
  %v590 = vsel %vm509, %v557, 0.0
  %v591 = vpack.c.bf16 %v414, %v413
  %v592 = vpack.c.bf16 %v416, %v415
  %v593 = vpack.c.bf16 %v418, %v417
  %v594 = vpack.c.bf16 %v420, %v419
  %v595 = vpack.c.bf16 %v422, %v421
  %v596 = vpack.c.bf16 %v424, %v423
  %v597 = vpack.c.bf16 %v426, %v425
  %v598 = vpack.c.bf16 %v428, %v427
  %v599 = vld [vmem:[%s5] sm:$0xf]
  %v600 = vld [vmem:[%s5 + $0x4] sm:$0xf]
  %v601 = vld [vmem:[%s5 + $0x8] sm:$0xf]
  %v602 = vld [vmem:[%s5 + $0xc] sm:$0xf]
  %v603 = vld [vmem:[%s5 + $0x10] sm:$0xf]
  %v604 = vld [vmem:[%s5 + $0x14] sm:$0xf]
  %v605 = vld [vmem:[%s5 + $0x18] sm:$0xf]
  %v606 = vld [vmem:[%s5 + $0x1c] sm:$0xf]
  %v607 = vld [vmem:[%s5 + $0x20] sm:$0xf]
  %v608 = vld [vmem:[%s5 + $0x24] sm:$0xf]
  %v609 = vld [vmem:[%s5 + $0x28] sm:$0xf]
  %v610 = vld [vmem:[%s5 + $0x2c] sm:$0xf]
  %v611 = vld [vmem:[%s5 + $0x30] sm:$0xf]
  %v612 = vld [vmem:[%s5 + $0x34] sm:$0xf]
  %v613 = vld [vmem:[%s5 + $0x38] sm:$0xf]
  %v614 = vld [vmem:[%s5 + $0x3c] sm:$0xf]
  %v615 = vpack.c.bf16 %v560, %v559
  %v616 = vpack.c.bf16 %v562, %v561
  %v617 = vpack.c.bf16 %v564, %v563
  %v618 = vpack.c.bf16 %v566, %v565
  %v619 = vpack.c.bf16 %v568, %v567
  %v620 = vpack.c.bf16 %v570, %v569
  %v621 = vpack.c.bf16 %v572, %v571
  %v622 = vpack.c.bf16 %v574, %v573
  %s623 = scalar_lea.vmem %s5, 64
  %v624 = vld [vmem:[%s623] sm:$0xf]
  %v625 = vld [vmem:[%s623 + $0x4] sm:$0xf]
  %v626 = vld [vmem:[%s623 + $0x8] sm:$0xf]
  %v627 = vld [vmem:[%s623 + $0xc] sm:$0xf]
  %v628 = vld [vmem:[%s623 + $0x10] sm:$0xf]
  %v629 = vld [vmem:[%s623 + $0x14] sm:$0xf]
  %v630 = vld [vmem:[%s623 + $0x18] sm:$0xf]
  %v631 = vld [vmem:[%s623 + $0x1c] sm:$0xf]
  %v632 = vld [vmem:[%s623 + $0x20] sm:$0xf]
  %v633 = vld [vmem:[%s623 + $0x24] sm:$0xf]
  %v634 = vld [vmem:[%s623 + $0x28] sm:$0xf]
  %v635 = vld [vmem:[%s623 + $0x2c] sm:$0xf]
  %v636 = vld [vmem:[%s623 + $0x30] sm:$0xf]
  %v637 = vld [vmem:[%s623 + $0x34] sm:$0xf]
  %v638 = vld [vmem:[%s623 + $0x38] sm:$0xf]
  %v639 = vld [vmem:[%s623 + $0x3c] sm:$0xf]
  %v656 = vunpack.c.l.b16 %v624
  %v657 = vunpack.c.l.b16 %v625
  %v658 = vunpack.c.l.b16 %v626
  %v659 = vunpack.c.l.b16 %v627
  %v660 = vunpack.c.l.b16 %v628
  %v661 = vunpack.c.l.b16 %v629
  %v662 = vunpack.c.l.b16 %v630
  %v663 = vunpack.c.l.b16 %v631
  %v664 = vunpack.c.l.b16 %v632
  %v665 = vunpack.c.l.b16 %v633
  %v666 = vunpack.c.l.b16 %v634
  %v667 = vunpack.c.l.b16 %v635
  %v668 = vunpack.c.l.b16 %v636
  %v669 = vunpack.c.l.b16 %v637
  %v670 = vunpack.c.l.b16 %v638
  %v671 = vunpack.c.l.b16 %v639
  %v672 = vpack.c.b16 %v657, %v656
  %v673 = vpack.c.b16 %v659, %v658
  %v674 = vpack.c.b16 %v661, %v660
  %v675 = vpack.c.b16 %v663, %v662
  %v676 = vpack.c.b16 %v665, %v664
  %v677 = vpack.c.b16 %v667, %v666
  %v678 = vpack.c.b16 %v669, %v668
  %v679 = vpack.c.b16 %v671, %v670
  %688 = vmatprep.subr.bf16.mxu0 0
  %689 = vmatpush1.bf16.msra.mxu0 %v672
  %690 = vmatprep.subr.bf16.mxu0 0
  %691 = vmatpush1.bf16.msra.mxu0 %v673
  %692 = vmatprep.subr.bf16.mxu0 0
  %693 = vmatpush1.bf16.msra.mxu0 %v674
  %694 = vmatprep.subr.bf16.mxu0 0
  %695 = vmatpush1.bf16.msra.mxu0 %v675
  %696 = vmatprep.subr.bf16.mxu0 0
  %697 = vmatpush1.bf16.msra.mxu0 %v676
  %698 = vmatprep.subr.bf16.mxu0 0
  %699 = vmatpush1.bf16.msra.mxu0 %v677
  %700 = vmatprep.subr.bf16.mxu0 0
  %701 = vmatpush1.bf16.msra.mxu0 %v678
  %702 = vmatprep.subr.bf16.mxu0 0
  %703 = vmatpush1.bf16.msra.mxu0 %v679
  %704 = vmatprep.subr.bf16.mxu0 0
  %705 = vmatpush1.bf16.msra.mxu0 0
  %706 = vmatprep.subr.bf16.mxu0 0
  %707 = vmatpush1.bf16.msra.mxu0 0
  %708 = vmatprep.subr.bf16.mxu0 0
  %709 = vmatpush1.bf16.msra.mxu0 0
  %710 = vmatprep.subr.bf16.mxu0 0
  %711 = vmatpush1.bf16.msra.mxu0 0
  %712 = vmatprep.subr.bf16.mxu0 0
  %713 = vmatpush1.bf16.msra.mxu0 0
  %714 = vmatprep.subr.bf16.mxu0 0
  %715 = vmatpush1.bf16.msra.mxu0 0
  %716 = vmatprep.subr.bf16.mxu0 0
  %717 = vmatpush1.bf16.msra.mxu0 0
  %718 = vmatprep.subr.bf16.mxu0 0
  %719 = vmatpush1.bf16.msra.mxu0 0
  %720 = vmatprep.mubr.bf16.mxu0 0
  %721 = vmatmul.mubr.bf16.gmra.mrb[0].mxu0 %v615
  %v722 = vpop.f32.mrb[0].mxu0
  %v723 = vadd.f32 0.0, %v722
  %v724 = vpop.f32.mrb[0].mxu0
  %v725 = vpop.f32.mrb[0].mxu0
  %v726 = vadd.f32 0.0, %v725
  %v727 = vpop.f32.mrb[0].mxu0
  %728 = vmatprep.mubr.bf16.mxu0 0
  %729 = vmatmul.mubr.bf16.gmra.mrb[0].mxu0 %v616
  %v730 = vpop.f32.mrb[0].mxu0
  %v731 = vadd.f32 0.0, %v730
  %v732 = vpop.f32.mrb[0].mxu0
  %v733 = vpop.f32.mrb[0].mxu0
  %v734 = vadd.f32 0.0, %v733
  %v735 = vpop.f32.mrb[0].mxu0
  %736 = vmatprep.mubr.bf16.mxu0 0
  %737 = vmatmul.mubr.bf16.gmra.mrb[0].mxu0 %v617
  %v738 = vpop.f32.mrb[0].mxu0
  %v739 = vadd.f32 0.0, %v738
  %v740 = vpop.f32.mrb[0].mxu0
  %v741 = vpop.f32.mrb[0].mxu0
  %v742 = vadd.f32 0.0, %v741
  %v743 = vpop.f32.mrb[0].mxu0
  %744 = vmatprep.mubr.bf16.mxu0 0
  %745 = vmatmul.mubr.bf16.gmra.mrb[0].mxu0 %v618
  %v746 = vpop.f32.mrb[0].mxu0
  %v747 = vadd.f32 0.0, %v746
  %v748 = vpop.f32.mrb[0].mxu0
  %v749 = vpop.f32.mrb[0].mxu0
  %v750 = vadd.f32 0.0, %v749
  %v751 = vpop.f32.mrb[0].mxu0
  %752 = vmatprep.mubr.bf16.mxu0 0
  %753 = vmatmul.mubr.bf16.gmra.mrb[0].mxu0 %v619
  %v754 = vpop.f32.mrb[0].mxu0
  %v755 = vadd.f32 0.0, %v754
  %v756 = vpop.f32.mrb[0].mxu0
  %v757 = vpop.f32.mrb[0].mxu0
  %v758 = vadd.f32 0.0, %v757
  %v759 = vpop.f32.mrb[0].mxu0
  %760 = vmatprep.mubr.bf16.mxu0 0
  %761 = vmatmul.mubr.bf16.gmra.mrb[0].mxu0 %v620
  %v762 = vpop.f32.mrb[0].mxu0
  %v763 = vadd.f32 0.0, %v762
  %v764 = vpop.f32.mrb[0].mxu0
  %v765 = vpop.f32.mrb[0].mxu0
  %v766 = vadd.f32 0.0, %v765
  %v767 = vpop.f32.mrb[0].mxu0
  %768 = vmatprep.mubr.bf16.mxu0 0
  %769 = vmatmul.mubr.bf16.gmra.mrb[0].mxu0 %v621
  %v770 = vpop.f32.mrb[0].mxu0
  %v771 = vadd.f32 0.0, %v770
  %v772 = vpop.f32.mrb[0].mxu0
  %v773 = vpop.f32.mrb[0].mxu0
  %v774 = vadd.f32 0.0, %v773
  %v775 = vpop.f32.mrb[0].mxu0
  %776 = vmatprep.mubr.bf16.mxu0 0
  %777 = vmatmul.mubr.bf16.gmra.mrb[0].mxu0 %v622
  %v778 = vpop.f32.mrb[0].mxu0
  %v779 = vadd.f32 0.0, %v778
  %v780 = vpop.f32.mrb[0].mxu0
  %v781 = vpop.f32.mrb[0].mxu0
  %v782 = vadd.f32 0.0, %v781
  %v783 = vpop.f32.mrb[0].mxu0
  %784 = vdwg.mxu0
  %v801 = vunpack.c.l.b16 %v599
  %v802 = vunpack.c.l.b16 %v600
  %v803 = vunpack.c.l.b16 %v601
  %v804 = vunpack.c.l.b16 %v602
  %v805 = vunpack.c.l.b16 %v603
  %v806 = vunpack.c.l.b16 %v604
  %v807 = vunpack.c.l.b16 %v605
  %v808 = vunpack.c.l.b16 %v606
  %v809 = vunpack.c.l.b16 %v607
  %v810 = vunpack.c.l.b16 %v608
  %v811 = vunpack.c.l.b16 %v609
  %v812 = vunpack.c.l.b16 %v610
  %v813 = vunpack.c.l.b16 %v611
  %v814 = vunpack.c.l.b16 %v612
  %v815 = vunpack.c.l.b16 %v613
  %v816 = vunpack.c.l.b16 %v614
  %v817 = vpack.c.b16 %v802, %v801
  %v818 = vpack.c.b16 %v804, %v803
  %v819 = vpack.c.b16 %v806, %v805
  %v820 = vpack.c.b16 %v808, %v807
  %v821 = vpack.c.b16 %v810, %v809
  %v822 = vpack.c.b16 %v812, %v811
  %v823 = vpack.c.b16 %v814, %v813
  %v824 = vpack.c.b16 %v816, %v815
  %833 = vmatprep.subr.bf16.mxu0 0
  %834 = vmatpush1.bf16.msra.mxu0 %v817
  %835 = vmatprep.subr.bf16.mxu0 0
  %836 = vmatpush1.bf16.msra.mxu0 %v818
  %837 = vmatprep.subr.bf16.mxu0 0
  %838 = vmatpush1.bf16.msra.mxu0 %v819
  %839 = vmatprep.subr.bf16.mxu0 0
  %840 = vmatpush1.bf16.msra.mxu0 %v820
  %841 = vmatprep.subr.bf16.mxu0 0
  %842 = vmatpush1.bf16.msra.mxu0 %v821
  %843 = vmatprep.subr.bf16.mxu0 0
  %844 = vmatpush1.bf16.msra.mxu0 %v822
  %845 = vmatprep.subr.bf16.mxu0 0
  %846 = vmatpush1.bf16.msra.mxu0 %v823
  %847 = vmatprep.subr.bf16.mxu0 0
  %848 = vmatpush1.bf16.msra.mxu0 %v824
  %849 = vmatprep.subr.bf16.mxu0 0
  %850 = vmatpush1.bf16.msra.mxu0 0
  %851 = vmatprep.subr.bf16.mxu0 0
  %852 = vmatpush1.bf16.msra.mxu0 0
  %853 = vmatprep.subr.bf16.mxu0 0
  %854 = vmatpush1.bf16.msra.mxu0 0
  %855 = vmatprep.subr.bf16.mxu0 0
  %856 = vmatpush1.bf16.msra.mxu0 0
  %857 = vmatprep.subr.bf16.mxu0 0
  %858 = vmatpush1.bf16.msra.mxu0 0
  %859 = vmatprep.subr.bf16.mxu0 0
  %860 = vmatpush1.bf16.msra.mxu0 0
  %861 = vmatprep.subr.bf16.mxu0 0
  %862 = vmatpush1.bf16.msra.mxu0 0
  %863 = vmatprep.subr.bf16.mxu0 0
  %864 = vmatpush1.bf16.msra.mxu0 0
  %865 = vmatprep.mubr.bf16.mxu0 0
  %866 = vmatmul.mubr.bf16.gmra.mrb[0].mxu0 %v591
  %v867 = vpop.f32.mrb[0].mxu0
  %v868 = vadd.f32 %v723, %v867
  %v869 = vpop.f32.mrb[0].mxu0
  %v870 = vpop.f32.mrb[0].mxu0
  %v871 = vadd.f32 %v726, %v870
  %v872 = vpop.f32.mrb[0].mxu0
  %873 = vmatprep.mubr.bf16.mxu0 0
  %874 = vmatmul.mubr.bf16.gmra.mrb[0].mxu0 %v592
  %v875 = vpop.f32.mrb[0].mxu0
  %v876 = vadd.f32 %v731, %v875
  %v877 = vpop.f32.mrb[0].mxu0
  %v878 = vpop.f32.mrb[0].mxu0
  %v879 = vadd.f32 %v734, %v878
  %v880 = vpop.f32.mrb[0].mxu0
  %881 = vmatprep.mubr.bf16.mxu0 0
  %882 = vmatmul.mubr.bf16.gmra.mrb[0].mxu0 %v593
  %v883 = vpop.f32.mrb[0].mxu0
  %v884 = vadd.f32 %v739, %v883
  %v885 = vpop.f32.mrb[0].mxu0
  %v886 = vpop.f32.mrb[0].mxu0
  %v887 = vadd.f32 %v742, %v886
  %v888 = vpop.f32.mrb[0].mxu0
  %889 = vmatprep.mubr.bf16.mxu0 0
  %890 = vmatmul.mubr.bf16.gmra.mrb[0].mxu0 %v594
  %v891 = vpop.f32.mrb[0].mxu0
  %v892 = vadd.f32 %v747, %v891
  %v893 = vpop.f32.mrb[0].mxu0
  %v894 = vpop.f32.mrb[0].mxu0
  %v895 = vadd.f32 %v750, %v894
  %v896 = vpop.f32.mrb[0].mxu0
  %897 = vmatprep.mubr.bf16.mxu0 0
  %898 = vmatmul.mubr.bf16.gmra.mrb[0].mxu0 %v595
  %v899 = vpop.f32.mrb[0].mxu0
  %v900 = vadd.f32 %v755, %v899
  %v901 = vpop.f32.mrb[0].mxu0
  %v902 = vpop.f32.mrb[0].mxu0
  %v903 = vadd.f32 %v758, %v902
  %v904 = vpop.f32.mrb[0].mxu0
  %905 = vmatprep.mubr.bf16.mxu0 0
  %906 = vmatmul.mubr.bf16.gmra.mrb[0].mxu0 %v596
  %v907 = vpop.f32.mrb[0].mxu0
  %v908 = vadd.f32 %v763, %v907
  %v909 = vpop.f32.mrb[0].mxu0
  %v910 = vpop.f32.mrb[0].mxu0
  %v911 = vadd.f32 %v766, %v910
  %v912 = vpop.f32.mrb[0].mxu0
  %913 = vmatprep.mubr.bf16.mxu0 0
  %914 = vmatmul.mubr.bf16.gmra.mrb[0].mxu0 %v597
  %v915 = vpop.f32.mrb[0].mxu0
  %v916 = vadd.f32 %v771, %v915
  %v917 = vpop.f32.mrb[0].mxu0
  %v918 = vpop.f32.mrb[0].mxu0
  %v919 = vadd.f32 %v774, %v918
  %v920 = vpop.f32.mrb[0].mxu0
  %921 = vmatprep.mubr.bf16.mxu0 0
  %922 = vmatmul.mubr.bf16.gmra.mrb[0].mxu0 %v598
  %v923 = vpop.f32.mrb[0].mxu0
  %v924 = vadd.f32 %v779, %v923
  %v925 = vpop.f32.mrb[0].mxu0
  %v926 = vpop.f32.mrb[0].mxu0
  %v927 = vadd.f32 %v782, %v926
  %v928 = vpop.f32.mrb[0].mxu0
  %929 = vdwg.mxu0
  %v930 = vpack.c.bf16 %v544, %v543
  %v931 = vpack.c.bf16 %v546, %v545
  %v932 = vpack.c.bf16 %v548, %v547
  %v933 = vpack.c.bf16 %v550, %v549
  %v934 = vpack.c.bf16 %v552, %v551
  %v935 = vpack.c.bf16 %v554, %v553
  %v936 = vpack.c.bf16 %v556, %v555
  %v937 = vpack.c.bf16 %v558, %v557
  %s938 = scalar_lea.vmem %s5, 128
  %v939 = vld [vmem:[%s938] sm:$0xf]
  %v940 = vld [vmem:[%s938 + $0x4] sm:$0xf]
  %v941 = vld [vmem:[%s938 + $0x8] sm:$0xf]
  %v942 = vld [vmem:[%s938 + $0xc] sm:$0xf]
  %v943 = vld [vmem:[%s938 + $0x10] sm:$0xf]
  %v944 = vld [vmem:[%s938 + $0x14] sm:$0xf]
  %v945 = vld [vmem:[%s938 + $0x18] sm:$0xf]
  %v946 = vld [vmem:[%s938 + $0x1c] sm:$0xf]
  %v947 = vld [vmem:[%s938 + $0x20] sm:$0xf]
  %v948 = vld [vmem:[%s938 + $0x24] sm:$0xf]
  %v949 = vld [vmem:[%s938 + $0x28] sm:$0xf]
  %v950 = vld [vmem:[%s938 + $0x2c] sm:$0xf]
  %v951 = vld [vmem:[%s938 + $0x30] sm:$0xf]
  %v952 = vld [vmem:[%s938 + $0x34] sm:$0xf]
  %v953 = vld [vmem:[%s938 + $0x38] sm:$0xf]
  %v954 = vld [vmem:[%s938 + $0x3c] sm:$0xf]
  %v971 = vunpack.c.l.b16 %v939
  %v972 = vunpack.c.l.b16 %v940
  %v973 = vunpack.c.l.b16 %v941
  %v974 = vunpack.c.l.b16 %v942
  %v975 = vunpack.c.l.b16 %v943
  %v976 = vunpack.c.l.b16 %v944
  %v977 = vunpack.c.l.b16 %v945
  %v978 = vunpack.c.l.b16 %v946
  %v979 = vunpack.c.l.b16 %v947
  %v980 = vunpack.c.l.b16 %v948
  %v981 = vunpack.c.l.b16 %v949
  %v982 = vunpack.c.l.b16 %v950
  %v983 = vunpack.c.l.b16 %v951
  %v984 = vunpack.c.l.b16 %v952
  %v985 = vunpack.c.l.b16 %v953
  %v986 = vunpack.c.l.b16 %v954
  %v987 = vpack.c.b16 %v972, %v971
  %v988 = vpack.c.b16 %v974, %v973
  %v989 = vpack.c.b16 %v976, %v975
  %v990 = vpack.c.b16 %v978, %v977
  %v991 = vpack.c.b16 %v980, %v979
  %v992 = vpack.c.b16 %v982, %v981
  %v993 = vpack.c.b16 %v984, %v983
  %v994 = vpack.c.b16 %v986, %v985
  %1003 = vmatprep.subr.bf16.mxu0 0
  %1004 = vmatpush1.bf16.msra.mxu0 %v987
  %1005 = vmatprep.subr.bf16.mxu0 0
  %1006 = vmatpush1.bf16.msra.mxu0 %v988
  %1007 = vmatprep.subr.bf16.mxu0 0
  %1008 = vmatpush1.bf16.msra.mxu0 %v989
  %1009 = vmatprep.subr.bf16.mxu0 0
  %1010 = vmatpush1.bf16.msra.mxu0 %v990
  %1011 = vmatprep.subr.bf16.mxu0 0
  %1012 = vmatpush1.bf16.msra.mxu0 %v991
  %1013 = vmatprep.subr.bf16.mxu0 0
  %1014 = vmatpush1.bf16.msra.mxu0 %v992
  %1015 = vmatprep.subr.bf16.mxu0 0
  %1016 = vmatpush1.bf16.msra.mxu0 %v993
  %1017 = vmatprep.subr.bf16.mxu0 0
  %1018 = vmatpush1.bf16.msra.mxu0 %v994
  %1019 = vmatprep.subr.bf16.mxu0 0
  %1020 = vmatpush1.bf16.msra.mxu0 0
  %1021 = vmatprep.subr.bf16.mxu0 0
  %1022 = vmatpush1.bf16.msra.mxu0 0
  %1023 = vmatprep.subr.bf16.mxu0 0
  %1024 = vmatpush1.bf16.msra.mxu0 0
  %1025 = vmatprep.subr.bf16.mxu0 0
  %1026 = vmatpush1.bf16.msra.mxu0 0
  %1027 = vmatprep.subr.bf16.mxu0 0
  %1028 = vmatpush1.bf16.msra.mxu0 0
  %1029 = vmatprep.subr.bf16.mxu0 0
  %1030 = vmatpush1.bf16.msra.mxu0 0
  %1031 = vmatprep.subr.bf16.mxu0 0
  %1032 = vmatpush1.bf16.msra.mxu0 0
  %1033 = vmatprep.subr.bf16.mxu0 0
  %1034 = vmatpush1.bf16.msra.mxu0 0
  %1035 = vmatprep.mubr.bf16.mxu0 0
  %1036 = vmatmul.mubr.bf16.gmra.mrb[0].mxu0 %v930
  %v1037 = vpop.f32.mrb[0].mxu0
  %v1038 = vadd.f32 0.0, %v1037
  %v1039 = vpop.f32.mrb[0].mxu0
  %v1040 = vpop.f32.mrb[0].mxu0
  %v1041 = vadd.f32 0.0, %v1040
  %v1042 = vpop.f32.mrb[0].mxu0
  %1043 = vmatprep.mubr.bf16.mxu0 0
  %1044 = vmatmul.mubr.bf16.gmra.mrb[0].mxu0 %v931
  %v1045 = vpop.f32.mrb[0].mxu0
  %v1046 = vadd.f32 0.0, %v1045
  %v1047 = vpop.f32.mrb[0].mxu0
  %v1048 = vpop.f32.mrb[0].mxu0
  %v1049 = vadd.f32 0.0, %v1048
  %v1050 = vpop.f32.mrb[0].mxu0
  %1051 = vmatprep.mubr.bf16.mxu0 0
  %1052 = vmatmul.mubr.bf16.gmra.mrb[0].mxu0 %v932
  %v1053 = vpop.f32.mrb[0].mxu0
  %v1054 = vadd.f32 0.0, %v1053
  %v1055 = vpop.f32.mrb[0].mxu0
  %v1056 = vpop.f32.mrb[0].mxu0
  %v1057 = vadd.f32 0.0, %v1056
  %v1058 = vpop.f32.mrb[0].mxu0
  %1059 = vmatprep.mubr.bf16.mxu0 0
  %1060 = vmatmul.mubr.bf16.gmra.mrb[0].mxu0 %v933
  %v1061 = vpop.f32.mrb[0].mxu0
  %v1062 = vadd.f32 0.0, %v1061
  %v1063 = vpop.f32.mrb[0].mxu0
  %v1064 = vpop.f32.mrb[0].mxu0
  %v1065 = vadd.f32 0.0, %v1064
  %v1066 = vpop.f32.mrb[0].mxu0
  %1067 = vmatprep.mubr.bf16.mxu0 0
  %1068 = vmatmul.mubr.bf16.gmra.mrb[0].mxu0 %v934
  %v1069 = vpop.f32.mrb[0].mxu0
  %v1070 = vadd.f32 0.0, %v1069
  %v1071 = vpop.f32.mrb[0].mxu0
  %v1072 = vpop.f32.mrb[0].mxu0
  %v1073 = vadd.f32 0.0, %v1072
  %v1074 = vpop.f32.mrb[0].mxu0
  %1075 = vmatprep.mubr.bf16.mxu0 0
  %1076 = vmatmul.mubr.bf16.gmra.mrb[0].mxu0 %v935
  %v1077 = vpop.f32.mrb[0].mxu0
  %v1078 = vadd.f32 0.0, %v1077
  %v1079 = vpop.f32.mrb[0].mxu0
  %v1080 = vpop.f32.mrb[0].mxu0
  %v1081 = vadd.f32 0.0, %v1080
  %v1082 = vpop.f32.mrb[0].mxu0
  %1083 = vmatprep.mubr.bf16.mxu0 0
  %1084 = vmatmul.mubr.bf16.gmra.mrb[0].mxu0 %v936
  %v1085 = vpop.f32.mrb[0].mxu0
  %v1086 = vadd.f32 0.0, %v1085
  %v1087 = vpop.f32.mrb[0].mxu0
  %v1088 = vpop.f32.mrb[0].mxu0
  %v1089 = vadd.f32 0.0, %v1088
  %v1090 = vpop.f32.mrb[0].mxu0
  %1091 = vmatprep.mubr.bf16.mxu0 0
  %1092 = vmatmul.mubr.bf16.gmra.mrb[0].mxu0 %v937
  %v1093 = vpop.f32.mrb[0].mxu0
  %v1094 = vadd.f32 0.0, %v1093
  %v1095 = vpop.f32.mrb[0].mxu0
  %v1096 = vpop.f32.mrb[0].mxu0
  %v1097 = vadd.f32 0.0, %v1096
  %v1098 = vpop.f32.mrb[0].mxu0
  %1099 = vdwg.mxu0
  %v1100 = vadd.f32 %v868, %v1038
  %v1101 = vadd.f32 %v871, %v1041
  %v1102 = vadd.f32 %v876, %v1046
  %v1103 = vadd.f32 %v879, %v1049
  %v1104 = vadd.f32 %v884, %v1054
  %v1105 = vadd.f32 %v887, %v1057
  %v1106 = vadd.f32 %v892, %v1062
  %v1107 = vadd.f32 %v895, %v1065
  %v1108 = vadd.f32 %v900, %v1070
  %v1109 = vadd.f32 %v903, %v1073
  %v1110 = vadd.f32 %v908, %v1078
  %v1111 = vadd.f32 %v911, %v1081
  %v1112 = vadd.f32 %v916, %v1086
  %v1113 = vadd.f32 %v919, %v1089
  %v1114 = vadd.f32 %v924, %v1094
  %v1115 = vadd.f32 %v927, %v1097
  %v1116 = vpack.c.bf16 %v576, %v575
  %v1117 = vpack.c.bf16 %v578, %v577
  %v1118 = vpack.c.bf16 %v580, %v579
  %v1119 = vpack.c.bf16 %v582, %v581
  %v1120 = vpack.c.bf16 %v584, %v583
  %v1121 = vpack.c.bf16 %v586, %v585
  %v1122 = vpack.c.bf16 %v588, %v587
  %v1123 = vpack.c.bf16 %v590, %v589
  %s1124 = scalar_lea.vmem %s5, 192
  %v1125 = vld [vmem:[%s1124] sm:$0xf]
  %v1126 = vld [vmem:[%s1124 + $0x4] sm:$0xf]
  %v1127 = vld [vmem:[%s1124 + $0x8] sm:$0xf]
  %v1128 = vld [vmem:[%s1124 + $0xc] sm:$0xf]
  %v1129 = vld [vmem:[%s1124 + $0x10] sm:$0xf]
  %v1130 = vld [vmem:[%s1124 + $0x14] sm:$0xf]
  %v1131 = vld [vmem:[%s1124 + $0x18] sm:$0xf]
  %v1132 = vld [vmem:[%s1124 + $0x1c] sm:$0xf]
  %v1133 = vld [vmem:[%s1124 + $0x20] sm:$0xf]
  %v1134 = vld [vmem:[%s1124 + $0x24] sm:$0xf]
  %v1135 = vld [vmem:[%s1124 + $0x28] sm:$0xf]
  %v1136 = vld [vmem:[%s1124 + $0x2c] sm:$0xf]
  %v1137 = vld [vmem:[%s1124 + $0x30] sm:$0xf]
  %v1138 = vld [vmem:[%s1124 + $0x34] sm:$0xf]
  %v1139 = vld [vmem:[%s1124 + $0x38] sm:$0xf]
  %v1140 = vld [vmem:[%s1124 + $0x3c] sm:$0xf]
  %v1157 = vunpack.c.l.b16 %v1125
  %v1158 = vunpack.c.l.b16 %v1126
  %v1159 = vunpack.c.l.b16 %v1127
  %v1160 = vunpack.c.l.b16 %v1128
  %v1161 = vunpack.c.l.b16 %v1129
  %v1162 = vunpack.c.l.b16 %v1130
  %v1163 = vunpack.c.l.b16 %v1131
  %v1164 = vunpack.c.l.b16 %v1132
  %v1165 = vunpack.c.l.b16 %v1133
  %v1166 = vunpack.c.l.b16 %v1134
  %v1167 = vunpack.c.l.b16 %v1135
  %v1168 = vunpack.c.l.b16 %v1136
  %v1169 = vunpack.c.l.b16 %v1137
  %v1170 = vunpack.c.l.b16 %v1138
  %v1171 = vunpack.c.l.b16 %v1139
  %v1172 = vunpack.c.l.b16 %v1140
  %v1173 = vpack.c.b16 %v1158, %v1157
  %v1174 = vpack.c.b16 %v1160, %v1159
  %v1175 = vpack.c.b16 %v1162, %v1161
  %v1176 = vpack.c.b16 %v1164, %v1163
  %v1177 = vpack.c.b16 %v1166, %v1165
  %v1178 = vpack.c.b16 %v1168, %v1167
  %v1179 = vpack.c.b16 %v1170, %v1169
  %v1180 = vpack.c.b16 %v1172, %v1171
  %1189 = vmatprep.subr.bf16.mxu0 0
  %1190 = vmatpush1.bf16.msra.mxu0 %v1173
  %1191 = vmatprep.subr.bf16.mxu0 0
  %1192 = vmatpush1.bf16.msra.mxu0 %v1174
  %1193 = vmatprep.subr.bf16.mxu0 0
  %1194 = vmatpush1.bf16.msra.mxu0 %v1175
  %1195 = vmatprep.subr.bf16.mxu0 0
  %1196 = vmatpush1.bf16.msra.mxu0 %v1176
  %1197 = vmatprep.subr.bf16.mxu0 0
  %1198 = vmatpush1.bf16.msra.mxu0 %v1177
  %1199 = vmatprep.subr.bf16.mxu0 0
  %1200 = vmatpush1.bf16.msra.mxu0 %v1178
  %1201 = vmatprep.subr.bf16.mxu0 0
  %1202 = vmatpush1.bf16.msra.mxu0 %v1179
  %1203 = vmatprep.subr.bf16.mxu0 0
  %1204 = vmatpush1.bf16.msra.mxu0 %v1180
  %1205 = vmatprep.subr.bf16.mxu0 0
  %1206 = vmatpush1.bf16.msra.mxu0 0
  %1207 = vmatprep.subr.bf16.mxu0 0
  %1208 = vmatpush1.bf16.msra.mxu0 0
  %1209 = vmatprep.subr.bf16.mxu0 0
  %1210 = vmatpush1.bf16.msra.mxu0 0
  %1211 = vmatprep.subr.bf16.mxu0 0
  %1212 = vmatpush1.bf16.msra.mxu0 0
  %1213 = vmatprep.subr.bf16.mxu0 0
  %1214 = vmatpush1.bf16.msra.mxu0 0
  %1215 = vmatprep.subr.bf16.mxu0 0
  %1216 = vmatpush1.bf16.msra.mxu0 0
  %1217 = vmatprep.subr.bf16.mxu0 0
  %1218 = vmatpush1.bf16.msra.mxu0 0
  %1219 = vmatprep.subr.bf16.mxu0 0
  %1220 = vmatpush1.bf16.msra.mxu0 0
  %1221 = vmatprep.mubr.bf16.mxu0 0
  %1222 = vmatmul.mubr.bf16.gmra.mrb[0].mxu0 %v1116
  %v1223 = vpop.f32.mrb[0].mxu0
  %v1224 = vadd.f32 0.0, %v1223
  %v1225 = vpop.f32.mrb[0].mxu0
  %v1226 = vpop.f32.mrb[0].mxu0
  %v1227 = vadd.f32 0.0, %v1226
  %v1228 = vpop.f32.mrb[0].mxu0
  %1229 = vmatprep.mubr.bf16.mxu0 0
  %1230 = vmatmul.mubr.bf16.gmra.mrb[0].mxu0 %v1117
  %v1231 = vpop.f32.mrb[0].mxu0
  %v1232 = vadd.f32 0.0, %v1231
  %v1233 = vpop.f32.mrb[0].mxu0
  %v1234 = vpop.f32.mrb[0].mxu0
  %v1235 = vadd.f32 0.0, %v1234
  %v1236 = vpop.f32.mrb[0].mxu0
  %1237 = vmatprep.mubr.bf16.mxu0 0
  %1238 = vmatmul.mubr.bf16.gmra.mrb[0].mxu0 %v1118
  %v1239 = vpop.f32.mrb[0].mxu0
  %v1240 = vadd.f32 0.0, %v1239
  %v1241 = vpop.f32.mrb[0].mxu0
  %v1242 = vpop.f32.mrb[0].mxu0
  %v1243 = vadd.f32 0.0, %v1242
  %v1244 = vpop.f32.mrb[0].mxu0
  %1245 = vmatprep.mubr.bf16.mxu0 0
  %1246 = vmatmul.mubr.bf16.gmra.mrb[0].mxu0 %v1119
  %v1247 = vpop.f32.mrb[0].mxu0
  %v1248 = vadd.f32 0.0, %v1247
  %v1249 = vpop.f32.mrb[0].mxu0
  %v1250 = vpop.f32.mrb[0].mxu0
  %v1251 = vadd.f32 0.0, %v1250
  %v1252 = vpop.f32.mrb[0].mxu0
  %1253 = vmatprep.mubr.bf16.mxu0 0
  %1254 = vmatmul.mubr.bf16.gmra.mrb[0].mxu0 %v1120
  %v1255 = vpop.f32.mrb[0].mxu0
  %v1256 = vadd.f32 0.0, %v1255
  %v1257 = vpop.f32.mrb[0].mxu0
  %v1258 = vpop.f32.mrb[0].mxu0
  %v1259 = vadd.f32 0.0, %v1258
  %v1260 = vpop.f32.mrb[0].mxu0
  %1261 = vmatprep.mubr.bf16.mxu0 0
  %1262 = vmatmul.mubr.bf16.gmra.mrb[0].mxu0 %v1121
  %v1263 = vpop.f32.mrb[0].mxu0
  %v1264 = vadd.f32 0.0, %v1263
  %v1265 = vpop.f32.mrb[0].mxu0
  %v1266 = vpop.f32.mrb[0].mxu0
  %v1267 = vadd.f32 0.0, %v1266
  %v1268 = vpop.f32.mrb[0].mxu0
  %1269 = vmatprep.mubr.bf16.mxu0 0
  %1270 = vmatmul.mubr.bf16.gmra.mrb[0].mxu0 %v1122
  %v1271 = vpop.f32.mrb[0].mxu0
  %v1272 = vadd.f32 0.0, %v1271
  %v1273 = vpop.f32.mrb[0].mxu0
  %v1274 = vpop.f32.mrb[0].mxu0
  %v1275 = vadd.f32 0.0, %v1274
  %v1276 = vpop.f32.mrb[0].mxu0
  %1277 = vmatprep.mubr.bf16.mxu0 0
  %1278 = vmatmul.mubr.bf16.gmra.mrb[0].mxu0 %v1123
  %v1279 = vpop.f32.mrb[0].mxu0
  %v1280 = vadd.f32 0.0, %v1279
  %v1281 = vpop.f32.mrb[0].mxu0
  %v1282 = vpop.f32.mrb[0].mxu0
  %v1283 = vadd.f32 0.0, %v1282
  %v1284 = vpop.f32.mrb[0].mxu0
  %1285 = vdwg.mxu0
  %v1286 = vadd.f32 %v1100, %v1224
  %v1287 = vadd.f32 %v1101, %v1227
  %v1288 = vadd.f32 %v1102, %v1232
  %v1289 = vadd.f32 %v1103, %v1235
  %v1290 = vadd.f32 %v1104, %v1240
  %v1291 = vadd.f32 %v1105, %v1243
  %v1292 = vadd.f32 %v1106, %v1248
  %v1293 = vadd.f32 %v1107, %v1251
  %v1294 = vadd.f32 %v1108, %v1256
  %v1295 = vadd.f32 %v1109, %v1259
  %v1296 = vadd.f32 %v1110, %v1264
  %v1297 = vadd.f32 %v1111, %v1267
  %v1298 = vadd.f32 %v1112, %v1272
  %v1299 = vadd.f32 %v1113, %v1275
  %v1300 = vadd.f32 %v1114, %v1280
  %v1301 = vadd.f32 %v1115, %v1283
  %v1302 = vld [vmem:[%s6] sm:$0x1]
  %v1304 = vlaneseq
  %v1305 = vshrl.u32 %v1304, 7
  %v1306 = vsub.s32 0, %v1305
  %v1307 = vrot.slane %v1302, %v1306
  %v1309 = vadd.f32 %v1286, %v1307
  %v1310 = vadd.f32 %v1287, %v1307
  %v1311 = vadd.f32 %v1288, %v1307
  %v1312 = vadd.f32 %v1289, %v1307
  %v1313 = vadd.f32 %v1290, %v1307
  %v1314 = vadd.f32 %v1291, %v1307
  %v1315 = vadd.f32 %v1292, %v1307
  %v1316 = vadd.f32 %v1293, %v1307
  %v1317 = vadd.f32 %v1294, %v1307
  %v1318 = vadd.f32 %v1295, %v1307
  %v1319 = vadd.f32 %v1296, %v1307
  %v1320 = vadd.f32 %v1297, %v1307
  %v1321 = vadd.f32 %v1298, %v1307
  %v1322 = vadd.f32 %v1299, %v1307
  %v1323 = vadd.f32 %v1300, %v1307
  %v1324 = vadd.f32 %v1301, %v1307
  %v1325 = vld [vmem:[%s7] sm:$0x1]
  %v1326 = vld [vmem:[%s8] sm:$0x1]
  %v1327 = vmax.f32 %v1309, 0.0
  %v1328 = vmax.f32 %v1310, 0.0
  %v1329 = vmax.f32 %v1311, 0.0
  %v1330 = vmax.f32 %v1312, 0.0
  %v1331 = vmax.f32 %v1313, 0.0
  %v1332 = vmax.f32 %v1314, 0.0
  %v1333 = vmax.f32 %v1315, 0.0
  %v1334 = vmax.f32 %v1316, 0.0
  %v1335 = vmax.f32 %v1317, 0.0
  %v1336 = vmax.f32 %v1318, 0.0
  %v1337 = vmax.f32 %v1319, 0.0
  %v1338 = vmax.f32 %v1320, 0.0
  %v1339 = vmax.f32 %v1321, 0.0
  %v1340 = vmax.f32 %v1322, 0.0
  %v1341 = vmax.f32 %v1323, 0.0
  %v1342 = vmax.f32 %v1324, 0.0
  %vm1343 = vcmask 261120
  %v1344 = vsel %vm1343, %v1327, 0.0
  %v1345 = vsel %vm1343, %v1328, 0.0
  %v1346 = vadd.f32 %v1344, %v1345
  %v1347 = vsel %vm1343, %v1329, 0.0
  %v1348 = vadd.f32 %v1346, %v1347
  %v1349 = vsel %vm1343, %v1330, 0.0
  %v1350 = vadd.f32 %v1348, %v1349
  %v1351 = vsel %vm1343, %v1331, 0.0
  %v1352 = vadd.f32 %v1350, %v1351
  %v1353 = vsel %vm1343, %v1332, 0.0
  %v1354 = vadd.f32 %v1352, %v1353
  %v1355 = vsel %vm1343, %v1333, 0.0
  %v1356 = vadd.f32 %v1354, %v1355
  %v1357 = vsel %vm1343, %v1334, 0.0
  %v1358 = vadd.f32 %v1356, %v1357
  %v1359 = vsel %vm1343, %v1335, 0.0
  %v1360 = vadd.f32 %v1358, %v1359
  %v1361 = vsel %vm1343, %v1336, 0.0
  %v1362 = vadd.f32 %v1360, %v1361
  %v1363 = vsel %vm1343, %v1337, 0.0
  %v1364 = vadd.f32 %v1362, %v1363
  %v1365 = vsel %vm1343, %v1338, 0.0
  %v1366 = vadd.f32 %v1364, %v1365
  %v1367 = vsel %vm1343, %v1339, 0.0
  %v1368 = vadd.f32 %v1366, %v1367
  %v1369 = vsel %vm1343, %v1340, 0.0
  %v1370 = vadd.f32 %v1368, %v1369
  %v1371 = vsel %vm1343, %v1341, 0.0
  %v1372 = vadd.f32 %v1370, %v1371
  %v1373 = vsel %vm1343, %v1342, 0.0
  %v1374 = vadd.f32 %v1372, %v1373
  %v1375 = vrot.slane %v1374, 4
  %v1376 = vadd.f32 %v1374, %v1375
  %v1377 = vrot.slane %v1376, 2
  %v1378 = vadd.f32 %v1376, %v1377
  %v1379 = vrot.slane %v1378, 1
  %v1380 = vadd.f32 %v1378, %v1379
  %v1381 = vmul.f32 %v1380, 0.0078125
  %v1382 = vmul.f32 %v1327, %v1327
  %v1383 = vmul.f32 %v1328, %v1328
  %v1384 = vmul.f32 %v1329, %v1329
  %v1385 = vmul.f32 %v1330, %v1330
  %v1386 = vmul.f32 %v1331, %v1331
  %v1387 = vmul.f32 %v1332, %v1332
  %v1388 = vmul.f32 %v1333, %v1333
  %v1389 = vmul.f32 %v1334, %v1334
  %v1390 = vmul.f32 %v1335, %v1335
  %v1391 = vmul.f32 %v1336, %v1336
  %v1392 = vmul.f32 %v1337, %v1337
  %v1393 = vmul.f32 %v1338, %v1338
  %v1394 = vmul.f32 %v1339, %v1339
  %v1395 = vmul.f32 %v1340, %v1340
  %v1396 = vmul.f32 %v1341, %v1341
  %v1397 = vmul.f32 %v1342, %v1342
  %v1398 = vsel %vm1343, %v1382, 0.0
  %v1399 = vsel %vm1343, %v1383, 0.0
  %v1400 = vadd.f32 %v1398, %v1399
  %v1401 = vsel %vm1343, %v1384, 0.0
  %v1402 = vadd.f32 %v1400, %v1401
  %v1403 = vsel %vm1343, %v1385, 0.0
  %v1404 = vadd.f32 %v1402, %v1403
  %v1405 = vsel %vm1343, %v1386, 0.0
  %v1406 = vadd.f32 %v1404, %v1405
  %v1407 = vsel %vm1343, %v1387, 0.0
  %v1408 = vadd.f32 %v1406, %v1407
  %v1409 = vsel %vm1343, %v1388, 0.0
  %v1410 = vadd.f32 %v1408, %v1409
  %v1411 = vsel %vm1343, %v1389, 0.0
  %v1412 = vadd.f32 %v1410, %v1411
  %v1413 = vsel %vm1343, %v1390, 0.0
  %v1414 = vadd.f32 %v1412, %v1413
  %v1415 = vsel %vm1343, %v1391, 0.0
  %v1416 = vadd.f32 %v1414, %v1415
  %v1417 = vsel %vm1343, %v1392, 0.0
  %v1418 = vadd.f32 %v1416, %v1417
  %v1419 = vsel %vm1343, %v1393, 0.0
  %v1420 = vadd.f32 %v1418, %v1419
  %v1421 = vsel %vm1343, %v1394, 0.0
  %v1422 = vadd.f32 %v1420, %v1421
  %v1423 = vsel %vm1343, %v1395, 0.0
  %v1424 = vadd.f32 %v1422, %v1423
  %v1425 = vsel %vm1343, %v1396, 0.0
  %v1426 = vadd.f32 %v1424, %v1425
  %v1427 = vsel %vm1343, %v1397, 0.0
  %v1428 = vadd.f32 %v1426, %v1427
  %v1429 = vrot.slane %v1428, 4
  %v1430 = vadd.f32 %v1428, %v1429
  %v1431 = vrot.slane %v1430, 2
  %v1432 = vadd.f32 %v1430, %v1431
  %v1433 = vrot.slane %v1432, 1
  %v1434 = vadd.f32 %v1432, %v1433
  %v1435 = vmul.f32 %v1434, 0.0078125
  %v1436 = vmul.f32 %v1381, %v1381
  %v1437 = vsub.f32 %v1435, %v1436
  %v1438 = vmax.f32 %v1437, 0.0
  %v1439 = vsub.f32 %v1327, %v1381
  %v1440 = vsub.f32 %v1328, %v1381
  %v1441 = vsub.f32 %v1329, %v1381
  %v1442 = vsub.f32 %v1330, %v1381
  %v1443 = vsub.f32 %v1331, %v1381
  %v1444 = vsub.f32 %v1332, %v1381
  %v1445 = vsub.f32 %v1333, %v1381
  %v1446 = vsub.f32 %v1334, %v1381
  %v1447 = vsub.f32 %v1335, %v1381
  %v1448 = vsub.f32 %v1336, %v1381
  %v1449 = vsub.f32 %v1337, %v1381
  %v1450 = vsub.f32 %v1338, %v1381
  %v1451 = vsub.f32 %v1339, %v1381
  %v1452 = vsub.f32 %v1340, %v1381
  %v1453 = vsub.f32 %v1341, %v1381
  %v1454 = vsub.f32 %v1342, %v1381
  %v1455 = vadd.f32 %v1438, 1e-05
  %v1456 = vrsqrt.pop %v1455
  %v1457 = vmul.f32 %v1456, %v1325
  %v1458 = vlaneseq
  %v1459 = vshrl.u32 %v1458, 7
  %v1460 = vsub.s32 0, %v1459
  %v1461 = vrot.slane %v1457, %v1460
  %v1462 = vmul.f32 %v1439, %v1461
  %v1463 = vmul.f32 %v1440, %v1461
  %v1464 = vmul.f32 %v1441, %v1461
  %v1465 = vmul.f32 %v1442, %v1461
  %v1466 = vmul.f32 %v1443, %v1461
  %v1467 = vmul.f32 %v1444, %v1461
  %v1468 = vmul.f32 %v1445, %v1461
  %v1469 = vmul.f32 %v1446, %v1461
  %v1470 = vmul.f32 %v1447, %v1461
  %v1471 = vmul.f32 %v1448, %v1461
  %v1472 = vmul.f32 %v1449, %v1461
  %v1473 = vmul.f32 %v1450, %v1461
  %v1474 = vmul.f32 %v1451, %v1461
  %v1475 = vmul.f32 %v1452, %v1461
  %v1476 = vmul.f32 %v1453, %v1461
  %v1477 = vmul.f32 %v1454, %v1461
  %v1479 = vlaneseq
  %v1480 = vshrl.u32 %v1479, 7
  %v1481 = vsub.s32 0, %v1480
  %v1482 = vrot.slane %v1326, %v1481
  %v1484 = vadd.f32 %v1462, %v1482
  %v1485 = vadd.f32 %v1463, %v1482
  %v1486 = vadd.f32 %v1464, %v1482
  %v1487 = vadd.f32 %v1465, %v1482
  %v1488 = vadd.f32 %v1466, %v1482
  %v1489 = vadd.f32 %v1467, %v1482
  %v1490 = vadd.f32 %v1468, %v1482
  %v1491 = vadd.f32 %v1469, %v1482
  %v1492 = vadd.f32 %v1470, %v1482
  %v1493 = vadd.f32 %v1471, %v1482
  %v1494 = vadd.f32 %v1472, %v1482
  %v1495 = vadd.f32 %v1473, %v1482
  %v1496 = vadd.f32 %v1474, %v1482
  %v1497 = vadd.f32 %v1475, %v1482
  %v1498 = vadd.f32 %v1476, %v1482
  %v1499 = vadd.f32 %v1477, %v1482
  %1500 = vst.msk [vmem:[%s9] sm:$0xff] %vm1343, %v1484
  %1501 = vst.msk [vmem:[%s9 + $0x8] sm:$0xff] %vm1343, %v1485
  %1502 = vst.msk [vmem:[%s9 + $0x10] sm:$0xff] %vm1343, %v1486
  %1503 = vst.msk [vmem:[%s9 + $0x18] sm:$0xff] %vm1343, %v1487
  %1504 = vst.msk [vmem:[%s9 + $0x20] sm:$0xff] %vm1343, %v1488
  %1505 = vst.msk [vmem:[%s9 + $0x28] sm:$0xff] %vm1343, %v1489
  %1506 = vst.msk [vmem:[%s9 + $0x30] sm:$0xff] %vm1343, %v1490
  %1507 = vst.msk [vmem:[%s9 + $0x38] sm:$0xff] %vm1343, %v1491
  %1508 = vst.msk [vmem:[%s9 + $0x40] sm:$0xff] %vm1343, %v1492
  %1509 = vst.msk [vmem:[%s9 + $0x48] sm:$0xff] %vm1343, %v1493
  %1510 = vst.msk [vmem:[%s9 + $0x50] sm:$0xff] %vm1343, %v1494
  %1511 = vst.msk [vmem:[%s9 + $0x58] sm:$0xff] %vm1343, %v1495
  %1512 = vst.msk [vmem:[%s9 + $0x60] sm:$0xff] %vm1343, %v1496
  %1513 = vst.msk [vmem:[%s9 + $0x68] sm:$0xff] %vm1343, %v1497
  %1514 = vst.msk [vmem:[%s9 + $0x70] sm:$0xff] %vm1343, %v1498
  %1515 = vst.msk [vmem:[%s9 + $0x78] sm:$0xff] %vm1343, %v1499
  // Predicated region
  $region38: #{encoder_forward.2} parent=0 // pred_check
    _
  $region39: #{encoder_forward.2} parent=0 // pred_check_branch
    %1517 = sbr.rel (0) target = $region41
  $region40: #{encoder_forward.2} parent=0 // pred_region
    _
  $region41: #{encoder_forward.2} parent=0 // pred_fallthru
    _
  // Predicated region
  $region42: #{encoder_forward.2} parent=0 // pred_check
    _
  $region43: #{encoder_forward.2} parent=0 // pred_check_branch
    %1519 = sbr.rel (0) target = $region45
  $region44: #{encoder_forward.2} parent=0 // pred_region
    _
  $region45: #{encoder_forward.2} parent=0 // pred_fallthru
    _

// kernel: encoder_forward.3
$region0: #{encoder_forward.3}
  #allocation0 [shape = 'u32[]', space=smem, size = 0x4, offset = 0x4, fixed_abs, tag = 'smem constant byte address 0x4 - core index']
  #allocation1 [shape = 'u32[144,128]{1,0:T(1,128)}', space=vmem, size = 0x12000, scoped, tag = 'internal scratch']
  %s0 = inlined_call_operand.vmem [shape: bf16[2,2048], index: 0, kind: input, shape index: {}]
  %s1 = inlined_call_operand.vmem [shape: bf16[2048,64], index: 1, kind: input, shape index: {}]
  %s2 = inlined_call_operand.vmem [shape: f32[1,64], index: 2, kind: input, shape index: {}]
  %s3 = inlined_call_operand.vmem [shape: f32[1,64], index: 3, kind: input, shape index: {}]
  %s4 = inlined_call_operand.vmem [shape: f32[1,64], index: 4, kind: input, shape index: {}]
  %s5 = inlined_call_operand.vmem [shape: bf16[64,64], index: 5, kind: input, shape index: {}]
  %s6 = inlined_call_operand.vmem [shape: f32[1,64], index: 6, kind: input, shape index: {}]
  %s7 = inlined_call_operand.hbm [shape: f32[2,64], index: 7, kind: output, shape index: {}]
  %s8 = sld [smem:[#allocation0]]
  $region38: #{encoder_forward.3} parent=0
    _
  %s10 = ssub.s32 1, %s8
  %s11 = scalar_select 0, %s10, %s8
  $region1: #{encoder_forward.3} parent=0
    #allocation2 [shape = 'u8[1024]{0}', space=vmem, size = 0x400, scoped, tag = 'output window, operand 0, single buffered']
    #allocation3 [shape = 's32[1]{0}', space=sflag, size = 0x4, scoped, tag = 'scoped memory for encoder_forward.3']
    %12 = vsyncpa [#allocation3], 0
    // Predicated region
    $region2: #{encoder_forward.3} parent=1 // pred_check
      _
    $region3: #{encoder_forward.3} parent=1 // pred_check_branch
      %14 = sbr.rel (0) target = $region5
    $region4: #{encoder_forward.3} parent=1 // pred_region
      _
    $region5: #{encoder_forward.3} parent=1 // pred_fallthru
      _
    // Predicated region
    $region6: #{encoder_forward.3} parent=1 // pred_check
      _
    $region7: #{encoder_forward.3} parent=1 // pred_check_branch
      %16 = sbr.rel (0) target = $region9
    $region8: #{encoder_forward.3} parent=1 // pred_region
      _
    $region9: #{encoder_forward.3} parent=1 // pred_fallthru
      _
    // Predicated region
    $region10: #{encoder_forward.3} parent=1 // pred_check
      _
    $region11: #{encoder_forward.3} parent=1 // pred_check_branch
      %18 = sbr.rel (0) target = $region13
    $region12: #{encoder_forward.3} parent=1 // pred_region
      _
    $region13: #{encoder_forward.3} parent=1 // pred_fallthru
      _
    // Predicated region
    $region14: #{encoder_forward.3} parent=1 // pred_check
      _
    $region15: #{encoder_forward.3} parent=1 // pred_check_branch
      %20 = sbr.rel (0) target = $region17
    $region16: #{encoder_forward.3} parent=1 // pred_region
      _
    $region17: #{encoder_forward.3} parent=1 // pred_fallthru
      _
    // Predicated region
    $region18: #{encoder_forward.3} parent=1 // pred_check
      _
    $region19: #{encoder_forward.3} parent=1 // pred_check_branch
      %22 = sbr.rel (0) target = $region21
    $region20: #{encoder_forward.3} parent=1 // pred_region
      _
    $region21: #{encoder_forward.3} parent=1 // pred_fallthru
      _
    // Predicated region
    $region22: #{encoder_forward.3} parent=1 // pred_check
      _
    $region23: #{encoder_forward.3} parent=1 // pred_check_branch
      %24 = sbr.rel (0) target = $region25
    $region24: #{encoder_forward.3} parent=1 // pred_region
      _
    $region25: #{encoder_forward.3} parent=1 // pred_fallthru
      _
    // Predicated region
    $region26: #{encoder_forward.3} parent=1 // pred_check
      _
    $region27: #{encoder_forward.3} parent=1 // pred_check_branch
      %26 = sbr.rel (0) target = $region29
    $region28: #{encoder_forward.3} parent=1 // pred_region
      _
    $region29: #{encoder_forward.3} parent=1 // pred_fallthru
      _
    %v28 = vld [vmem:[%s0] sm:$0xff]
    %v29 = vld [vmem:[%s0 + $0x8] sm:$0xff]
    %v30 = vld [vmem:[%s1] sm:$0xf]
    %v31 = vld [vmem:[%s1 + $0x4] sm:$0xf]
    %v32 = vld [vmem:[%s1 + $0x8] sm:$0xf]
    %v33 = vld [vmem:[%s1 + $0xc] sm:$0xf]
    %v34 = vld [vmem:[%s1 + $0x10] sm:$0xf]
    %v35 = vld [vmem:[%s1 + $0x14] sm:$0xf]
    %v36 = vld [vmem:[%s1 + $0x18] sm:$0xf]
    %v37 = vld [vmem:[%s1 + $0x1c] sm:$0xf]
    %v38 = vld [vmem:[%s1 + $0x20] sm:$0xf]
    %v39 = vld [vmem:[%s1 + $0x24] sm:$0xf]
    %v40 = vld [vmem:[%s1 + $0x28] sm:$0xf]
    %v41 = vld [vmem:[%s1 + $0x2c] sm:$0xf]
    %v42 = vld [vmem:[%s1 + $0x30] sm:$0xf]
    %v43 = vld [vmem:[%s1 + $0x34] sm:$0xf]
    %v44 = vld [vmem:[%s1 + $0x38] sm:$0xf]
    %v45 = vld [vmem:[%s1 + $0x3c] sm:$0xf]
    %v46 = vld [vmem:[%s1 + $0x40] sm:$0xf]
    %v47 = vld [vmem:[%s1 + $0x44] sm:$0xf]
    %v48 = vld [vmem:[%s1 + $0x48] sm:$0xf]
    %v49 = vld [vmem:[%s1 + $0x4c] sm:$0xf]
    %v50 = vld [vmem:[%s1 + $0x50] sm:$0xf]
    %v51 = vld [vmem:[%s1 + $0x54] sm:$0xf]
    %v52 = vld [vmem:[%s1 + $0x58] sm:$0xf]
    %v53 = vld [vmem:[%s1 + $0x5c] sm:$0xf]
    %v54 = vld [vmem:[%s1 + $0x60] sm:$0xf]
    %v55 = vld [vmem:[%s1 + $0x64] sm:$0xf]
    %v56 = vld [vmem:[%s1 + $0x68] sm:$0xf]
    %v57 = vld [vmem:[%s1 + $0x6c] sm:$0xf]
    %v58 = vld [vmem:[%s1 + $0x70] sm:$0xf]
    %v59 = vld [vmem:[%s1 + $0x74] sm:$0xf]
    %v60 = vld [vmem:[%s1 + $0x78] sm:$0xf]
    %v61 = vld [vmem:[%s1 + $0x7c] sm:$0xf]
    %v62 = vld [vmem:[%s1 + $0x80] sm:$0xf]
    %v63 = vld [vmem:[%s1 + $0x84] sm:$0xf]
    %v64 = vld [vmem:[%s1 + $0x88] sm:$0xf]
    %v65 = vld [vmem:[%s1 + $0x8c] sm:$0xf]
    %v66 = vld [vmem:[%s1 + $0x90] sm:$0xf]
    %v67 = vld [vmem:[%s1 + $0x94] sm:$0xf]
    %v68 = vld [vmem:[%s1 + $0x98] sm:$0xf]
    %v69 = vld [vmem:[%s1 + $0x9c] sm:$0xf]
    %v70 = vld [vmem:[%s1 + $0xa0] sm:$0xf]
    %v71 = vld [vmem:[%s1 + $0xa4] sm:$0xf]
    %v72 = vld [vmem:[%s1 + $0xa8] sm:$0xf]
    %v73 = vld [vmem:[%s1 + $0xac] sm:$0xf]
    %v74 = vld [vmem:[%s1 + $0xb0] sm:$0xf]
    %v75 = vld [vmem:[%s1 + $0xb4] sm:$0xf]
    %v76 = vld [vmem:[%s1 + $0xb8] sm:$0xf]
    %v77 = vld [vmem:[%s1 + $0xbc] sm:$0xf]
    %v78 = vld [vmem:[%s1 + $0xc0] sm:$0xf]
    %v79 = vld [vmem:[%s1 + $0xc4] sm:$0xf]
    %v80 = vld [vmem:[%s1 + $0xc8] sm:$0xf]
    %v81 = vld [vmem:[%s1 + $0xcc] sm:$0xf]
    %v82 = vld [vmem:[%s1 + $0xd0] sm:$0xf]
    %v83 = vld [vmem:[%s1 + $0xd4] sm:$0xf]
    %v84 = vld [vmem:[%s1 + $0xd8] sm:$0xf]
    %v85 = vld [vmem:[%s1 + $0xdc] sm:$0xf]
    %v86 = vld [vmem:[%s1 + $0xe0] sm:$0xf]
    %v87 = vld [vmem:[%s1 + $0xe4] sm:$0xf]
    %v88 = vld [vmem:[%s1 + $0xe8] sm:$0xf]
    %v89 = vld [vmem:[%s1 + $0xec] sm:$0xf]
    %v90 = vld [vmem:[%s1 + $0xf0] sm:$0xf]
    %v91 = vld [vmem:[%s1 + $0xf4] sm:$0xf]
    %v92 = vld [vmem:[%s1 + $0xf8] sm:$0xf]
    %v93 = vld [vmem:[%s1 + $0xfc] sm:$0xf]
    %v94 = vld [vmem:[%s1 + $0x100] sm:$0xf]
    %v95 = vld [vmem:[%s1 + $0x104] sm:$0xf]
    %v96 = vld [vmem:[%s1 + $0x108] sm:$0xf]
    %v97 = vld [vmem:[%s1 + $0x10c] sm:$0xf]
    %v98 = vld [vmem:[%s1 + $0x110] sm:$0xf]
    %v99 = vld [vmem:[%s1 + $0x114] sm:$0xf]
    %v100 = vld [vmem:[%s1 + $0x118] sm:$0xf]
    %v101 = vld [vmem:[%s1 + $0x11c] sm:$0xf]
    %v102 = vld [vmem:[%s1 + $0x120] sm:$0xf]
    %v103 = vld [vmem:[%s1 + $0x124] sm:$0xf]
    %v104 = vld [vmem:[%s1 + $0x128] sm:$0xf]
    %v105 = vld [vmem:[%s1 + $0x12c] sm:$0xf]
    %v106 = vld [vmem:[%s1 + $0x130] sm:$0xf]
    %v107 = vld [vmem:[%s1 + $0x134] sm:$0xf]
    %v108 = vld [vmem:[%s1 + $0x138] sm:$0xf]
    %v109 = vld [vmem:[%s1 + $0x13c] sm:$0xf]
    %v110 = vld [vmem:[%s1 + $0x140] sm:$0xf]
    %v111 = vld [vmem:[%s1 + $0x144] sm:$0xf]
    %v112 = vld [vmem:[%s1 + $0x148] sm:$0xf]
    %v113 = vld [vmem:[%s1 + $0x14c] sm:$0xf]
    %v114 = vld [vmem:[%s1 + $0x150] sm:$0xf]
    %v115 = vld [vmem:[%s1 + $0x154] sm:$0xf]
    %v116 = vld [vmem:[%s1 + $0x158] sm:$0xf]
    %v117 = vld [vmem:[%s1 + $0x15c] sm:$0xf]
    %v118 = vld [vmem:[%s1 + $0x160] sm:$0xf]
    %v119 = vld [vmem:[%s1 + $0x164] sm:$0xf]
    %v120 = vld [vmem:[%s1 + $0x168] sm:$0xf]
    %v121 = vld [vmem:[%s1 + $0x16c] sm:$0xf]
    %v122 = vld [vmem:[%s1 + $0x170] sm:$0xf]
    %v123 = vld [vmem:[%s1 + $0x174] sm:$0xf]
    %v124 = vld [vmem:[%s1 + $0x178] sm:$0xf]
    %v125 = vld [vmem:[%s1 + $0x17c] sm:$0xf]
    %v126 = vld [vmem:[%s1 + $0x180] sm:$0xf]
    %v127 = vld [vmem:[%s1 + $0x184] sm:$0xf]
    %v128 = vld [vmem:[%s1 + $0x188] sm:$0xf]
    %v129 = vld [vmem:[%s1 + $0x18c] sm:$0xf]
    %v130 = vld [vmem:[%s1 + $0x190] sm:$0xf]
    %v131 = vld [vmem:[%s1 + $0x194] sm:$0xf]
    %v132 = vld [vmem:[%s1 + $0x198] sm:$0xf]
    %v133 = vld [vmem:[%s1 + $0x19c] sm:$0xf]
    %v134 = vld [vmem:[%s1 + $0x1a0] sm:$0xf]
    %v135 = vld [vmem:[%s1 + $0x1a4] sm:$0xf]
    %v136 = vld [vmem:[%s1 + $0x1a8] sm:$0xf]
    %v137 = vld [vmem:[%s1 + $0x1ac] sm:$0xf]
    %v138 = vld [vmem:[%s1 + $0x1b0] sm:$0xf]
    %v139 = vld [vmem:[%s1 + $0x1b4] sm:$0xf]
    %v140 = vld [vmem:[%s1 + $0x1b8] sm:$0xf]
    %v141 = vld [vmem:[%s1 + $0x1bc] sm:$0xf]
    %v142 = vld [vmem:[%s1 + $0x1c0] sm:$0xf]
    %v143 = vld [vmem:[%s1 + $0x1c4] sm:$0xf]
    %v144 = vld [vmem:[%s1 + $0x1c8] sm:$0xf]
    %v145 = vld [vmem:[%s1 + $0x1cc] sm:$0xf]
    %v146 = vld [vmem:[%s1 + $0x1d0] sm:$0xf]
    %v147 = vld [vmem:[%s1 + $0x1d4] sm:$0xf]
    %v148 = vld [vmem:[%s1 + $0x1d8] sm:$0xf]
    %v149 = vld [vmem:[%s1 + $0x1dc] sm:$0xf]
    %v150 = vld [vmem:[%s1 + $0x1e0] sm:$0xf]
    %v151 = vld [vmem:[%s1 + $0x1e4] sm:$0xf]
    %v152 = vld [vmem:[%s1 + $0x1e8] sm:$0xf]
    %v153 = vld [vmem:[%s1 + $0x1ec] sm:$0xf]
    %v154 = vld [vmem:[%s1 + $0x1f0] sm:$0xf]
    %v155 = vld [vmem:[%s1 + $0x1f4] sm:$0xf]
    %v156 = vld [vmem:[%s1 + $0x1f8] sm:$0xf]
    %v157 = vld [vmem:[%s1 + $0x1fc] sm:$0xf]
    %v158 = vld [vmem:[%s1 + $0x200] sm:$0xf]
    %v159 = vld [vmem:[%s1 + $0x204] sm:$0xf]
    %v160 = vld [vmem:[%s1 + $0x208] sm:$0xf]
    %v161 = vld [vmem:[%s1 + $0x20c] sm:$0xf]
    %v162 = vld [vmem:[%s1 + $0x210] sm:$0xf]
    %v163 = vld [vmem:[%s1 + $0x214] sm:$0xf]
    %v164 = vld [vmem:[%s1 + $0x218] sm:$0xf]
    %v165 = vld [vmem:[%s1 + $0x21c] sm:$0xf]
    %v166 = vld [vmem:[%s1 + $0x220] sm:$0xf]
    %v167 = vld [vmem:[%s1 + $0x224] sm:$0xf]
    %v168 = vld [vmem:[%s1 + $0x228] sm:$0xf]
    %v169 = vld [vmem:[%s1 + $0x22c] sm:$0xf]
    %v170 = vld [vmem:[%s1 + $0x230] sm:$0xf]
    %v171 = vld [vmem:[%s1 + $0x234] sm:$0xf]
    %v172 = vld [vmem:[%s1 + $0x238] sm:$0xf]
    %v173 = vld [vmem:[%s1 + $0x23c] sm:$0xf]
    %v174 = vld [vmem:[%s1 + $0x240] sm:$0xf]
    %v175 = vld [vmem:[%s1 + $0x244] sm:$0xf]
    %v176 = vld [vmem:[%s1 + $0x248] sm:$0xf]
    %v177 = vld [vmem:[%s1 + $0x24c] sm:$0xf]
    %v178 = vld [vmem:[%s1 + $0x250] sm:$0xf]
    %v179 = vld [vmem:[%s1 + $0x254] sm:$0xf]
    %v180 = vld [vmem:[%s1 + $0x258] sm:$0xf]
    %v181 = vld [vmem:[%s1 + $0x25c] sm:$0xf]
    %v182 = vld [vmem:[%s1 + $0x260] sm:$0xf]
    %v183 = vld [vmem:[%s1 + $0x264] sm:$0xf]
    %v184 = vld [vmem:[%s1 + $0x268] sm:$0xf]
    %v185 = vld [vmem:[%s1 + $0x26c] sm:$0xf]
    %v186 = vld [vmem:[%s1 + $0x270] sm:$0xf]
    %v187 = vld [vmem:[%s1 + $0x274] sm:$0xf]
    %v188 = vld [vmem:[%s1 + $0x278] sm:$0xf]
    %v189 = vld [vmem:[%s1 + $0x27c] sm:$0xf]
    %v190 = vld [vmem:[%s1 + $0x280] sm:$0xf]
    %v191 = vld [vmem:[%s1 + $0x284] sm:$0xf]
    %v192 = vld [vmem:[%s1 + $0x288] sm:$0xf]
    %v193 = vld [vmem:[%s1 + $0x28c] sm:$0xf]
    %v194 = vld [vmem:[%s1 + $0x290] sm:$0xf]
    %v195 = vld [vmem:[%s1 + $0x294] sm:$0xf]
    %v196 = vld [vmem:[%s1 + $0x298] sm:$0xf]
    %v197 = vld [vmem:[%s1 + $0x29c] sm:$0xf]
    %v198 = vld [vmem:[%s1 + $0x2a0] sm:$0xf]
    %v199 = vld [vmem:[%s1 + $0x2a4] sm:$0xf]
    %v200 = vld [vmem:[%s1 + $0x2a8] sm:$0xf]
    %v201 = vld [vmem:[%s1 + $0x2ac] sm:$0xf]
    %v202 = vld [vmem:[%s1 + $0x2b0] sm:$0xf]
    %v203 = vld [vmem:[%s1 + $0x2b4] sm:$0xf]
    %v204 = vld [vmem:[%s1 + $0x2b8] sm:$0xf]
    %v205 = vld [vmem:[%s1 + $0x2bc] sm:$0xf]
    %v206 = vld [vmem:[%s1 + $0x2c0] sm:$0xf]
    %v207 = vld [vmem:[%s1 + $0x2c4] sm:$0xf]
    %v208 = vld [vmem:[%s1 + $0x2c8] sm:$0xf]
    %v209 = vld [vmem:[%s1 + $0x2cc] sm:$0xf]
    %v210 = vld [vmem:[%s1 + $0x2d0] sm:$0xf]
    %v211 = vld [vmem:[%s1 + $0x2d4] sm:$0xf]
    %v212 = vld [vmem:[%s1 + $0x2d8] sm:$0xf]
    %v213 = vld [vmem:[%s1 + $0x2dc] sm:$0xf]
    %v214 = vld [vmem:[%s1 + $0x2e0] sm:$0xf]
    %v215 = vld [vmem:[%s1 + $0x2e4] sm:$0xf]
    %v216 = vld [vmem:[%s1 + $0x2e8] sm:$0xf]
    %v217 = vld [vmem:[%s1 + $0x2ec] sm:$0xf]
    %v218 = vld [vmem:[%s1 + $0x2f0] sm:$0xf]
    %v219 = vld [vmem:[%s1 + $0x2f4] sm:$0xf]
    %v220 = vld [vmem:[%s1 + $0x2f8] sm:$0xf]
    %v221 = vld [vmem:[%s1 + $0x2fc] sm:$0xf]
    %v222 = vld [vmem:[%s1 + $0x300] sm:$0xf]
    %v223 = vld [vmem:[%s1 + $0x304] sm:$0xf]
    %v224 = vld [vmem:[%s1 + $0x308] sm:$0xf]
    %v225 = vld [vmem:[%s1 + $0x30c] sm:$0xf]
    %v226 = vld [vmem:[%s1 + $0x310] sm:$0xf]
    %v227 = vld [vmem:[%s1 + $0x314] sm:$0xf]
    %v228 = vld [vmem:[%s1 + $0x318] sm:$0xf]
    %v229 = vld [vmem:[%s1 + $0x31c] sm:$0xf]
    %v230 = vld [vmem:[%s1 + $0x320] sm:$0xf]
    %v231 = vld [vmem:[%s1 + $0x324] sm:$0xf]
    %v232 = vld [vmem:[%s1 + $0x328] sm:$0xf]
    %v233 = vld [vmem:[%s1 + $0x32c] sm:$0xf]
    %v234 = vld [vmem:[%s1 + $0x330] sm:$0xf]
    %v235 = vld [vmem:[%s1 + $0x334] sm:$0xf]
    %v236 = vld [vmem:[%s1 + $0x338] sm:$0xf]
    %v237 = vld [vmem:[%s1 + $0x33c] sm:$0xf]
    %v238 = vld [vmem:[%s1 + $0x340] sm:$0xf]
    %v239 = vld [vmem:[%s1 + $0x344] sm:$0xf]
    %v240 = vld [vmem:[%s1 + $0x348] sm:$0xf]
    %v241 = vld [vmem:[%s1 + $0x34c] sm:$0xf]
    %v242 = vld [vmem:[%s1 + $0x350] sm:$0xf]
    %v243 = vld [vmem:[%s1 + $0x354] sm:$0xf]
    %v244 = vld [vmem:[%s1 + $0x358] sm:$0xf]
    %v245 = vld [vmem:[%s1 + $0x35c] sm:$0xf]
    %v246 = vld [vmem:[%s1 + $0x360] sm:$0xf]
    %v247 = vld [vmem:[%s1 + $0x364] sm:$0xf]
    %v248 = vld [vmem:[%s1 + $0x368] sm:$0xf]
    %v249 = vld [vmem:[%s1 + $0x36c] sm:$0xf]
    %v250 = vld [vmem:[%s1 + $0x370] sm:$0xf]
    %v251 = vld [vmem:[%s1 + $0x374] sm:$0xf]
    %v252 = vld [vmem:[%s1 + $0x378] sm:$0xf]
    %v253 = vld [vmem:[%s1 + $0x37c] sm:$0xf]
    %v254 = vld [vmem:[%s1 + $0x380] sm:$0xf]
    %v255 = vld [vmem:[%s1 + $0x384] sm:$0xf]
    %v256 = vld [vmem:[%s1 + $0x388] sm:$0xf]
    %v257 = vld [vmem:[%s1 + $0x38c] sm:$0xf]
    %v258 = vld [vmem:[%s1 + $0x390] sm:$0xf]
    %v259 = vld [vmem:[%s1 + $0x394] sm:$0xf]
    %v260 = vld [vmem:[%s1 + $0x398] sm:$0xf]
    %v261 = vld [vmem:[%s1 + $0x39c] sm:$0xf]
    %v262 = vld [vmem:[%s1 + $0x3a0] sm:$0xf]
    %v263 = vld [vmem:[%s1 + $0x3a4] sm:$0xf]
    %v264 = vld [vmem:[%s1 + $0x3a8] sm:$0xf]
    %v265 = vld [vmem:[%s1 + $0x3ac] sm:$0xf]
    %v266 = vld [vmem:[%s1 + $0x3b0] sm:$0xf]
    %v267 = vld [vmem:[%s1 + $0x3b4] sm:$0xf]
    %v268 = vld [vmem:[%s1 + $0x3b8] sm:$0xf]
    %v269 = vld [vmem:[%s1 + $0x3bc] sm:$0xf]
    %v270 = vld [vmem:[%s1 + $0x3c0] sm:$0xf]
    %v271 = vld [vmem:[%s1 + $0x3c4] sm:$0xf]
    %v272 = vld [vmem:[%s1 + $0x3c8] sm:$0xf]
    %v273 = vld [vmem:[%s1 + $0x3cc] sm:$0xf]
    %v274 = vld [vmem:[%s1 + $0x3d0] sm:$0xf]
    %v275 = vld [vmem:[%s1 + $0x3d4] sm:$0xf]
    %v276 = vld [vmem:[%s1 + $0x3d8] sm:$0xf]
    %v277 = vld [vmem:[%s1 + $0x3dc] sm:$0xf]
    %v278 = vld [vmem:[%s1 + $0x3e0] sm:$0xf]
    %v279 = vld [vmem:[%s1 + $0x3e4] sm:$0xf]
    %v280 = vld [vmem:[%s1 + $0x3e8] sm:$0xf]
    %v281 = vld [vmem:[%s1 + $0x3ec] sm:$0xf]
    %v282 = vld [vmem:[%s1 + $0x3f0] sm:$0xf]
    %v283 = vld [vmem:[%s1 + $0x3f4] sm:$0xf]
    %v284 = vld [vmem:[%s1 + $0x3f8] sm:$0xf]
    %v285 = vld [vmem:[%s1 + $0x3fc] sm:$0xf]
    %v286 = vld [vmem:[%s2] sm:$0x1]
    %v288 = vlaneseq
    %v289 = vshrl.u32 %v288, 7
    %v290 = vsub.s32 0, %v289
    %v291 = vrot.slane %v286, %v290
    %v295 = vcombine.high %v28, %v28
    %v297 = vunpack.c.l.s4 1966171168
    %v298 = vunpack.c.0.s8 %v297
    %v299 = vlaneseq
    %v300 = vshrl.u32 %v299, 7
    %v301 = vsub.s32 %v298, %v300
    %v302 = vrot.slane %v28, %v301
    %v304 = vunpack.c.l.s4 1966171168
    %v305 = vunpack.c.0.s8 %v304
    %v306 = vlaneseq
    %v307 = vshrl.u32 %v306, 7
    %v308 = vsub.s32 %v305, %v307
    %v309 = vrot.slane %v295, %v308
    %v310 = vcombine.high %v302, %v302
    %v311 = vcombine.high %v309, %v309
    %v313 = vunpack.c.l.s4 1966171168
    %v314 = vunpack.c.0.s8 %v313
    %v315 = vlaneseq
    %v316 = vshrl.u32 %v315, 7
    %v317 = vsub.s32 %v314, %v316
    %v318 = vrot.slane %v302, %v317
    %v320 = vunpack.c.l.s4 1966171168
    %v321 = vunpack.c.0.s8 %v320
    %v322 = vlaneseq
    %v323 = vshrl.u32 %v322, 7
    %v324 = vsub.s32 %v321, %v323
    %v325 = vrot.slane %v309, %v324
    %v327 = vunpack.c.l.s4 1966171168
    %v328 = vunpack.c.0.s8 %v327
    %v329 = vlaneseq
    %v330 = vshrl.u32 %v329, 7
    %v331 = vsub.s32 %v328, %v330
    %v332 = vrot.slane %v310, %v331
    %v334 = vunpack.c.l.s4 1966171168
    %v335 = vunpack.c.0.s8 %v334
    %v336 = vlaneseq
    %v337 = vshrl.u32 %v336, 7
    %v338 = vsub.s32 %v335, %v337
    %v339 = vrot.slane %v311, %v338
    %v340 = vcombine.high %v318, %v318
    %v341 = vcombine.high %v325, %v325
    %v342 = vcombine.high %v332, %v332
    %v343 = vcombine.high %v339, %v339
    %v344 = vcombine.high %v29, %v29
    %v346 = vunpack.c.l.s4 1966171168
    %v347 = vunpack.c.0.s8 %v346
    %v348 = vlaneseq
    %v349 = vshrl.u32 %v348, 7
    %v350 = vsub.s32 %v347, %v349
    %v351 = vrot.slane %v29, %v350
    %v353 = vunpack.c.l.s4 1966171168
    %v354 = vunpack.c.0.s8 %v353
    %v355 = vlaneseq
    %v356 = vshrl.u32 %v355, 7
    %v357 = vsub.s32 %v354, %v356
    %v358 = vrot.slane %v344, %v357
    %v359 = vcombine.high %v351, %v351
    %v360 = vcombine.high %v358, %v358
    %v362 = vunpack.c.l.s4 1966171168
    %v363 = vunpack.c.0.s8 %v362
    %v364 = vlaneseq
    %v365 = vshrl.u32 %v364, 7
    %v366 = vsub.s32 %v363, %v365
    %v367 = vrot.slane %v351, %v366
    %v369 = vunpack.c.l.s4 1966171168
    %v370 = vunpack.c.0.s8 %v369
    %v371 = vlaneseq
    %v372 = vshrl.u32 %v371, 7
    %v373 = vsub.s32 %v370, %v372
    %v374 = vrot.slane %v358, %v373
    %v376 = vunpack.c.l.s4 1966171168
    %v377 = vunpack.c.0.s8 %v376
    %v378 = vlaneseq
    %v379 = vshrl.u32 %v378, 7
    %v380 = vsub.s32 %v377, %v379
    %v381 = vrot.slane %v359, %v380
    %v383 = vunpack.c.l.s4 1966171168
    %v384 = vunpack.c.0.s8 %v383
    %v385 = vlaneseq
    %v386 = vshrl.u32 %v385, 7
    %v387 = vsub.s32 %v384, %v386
    %v388 = vrot.slane %v360, %v387
    %v389 = vcombine.high %v367, %v367
    %v390 = vcombine.high %v374, %v374
    %v391 = vcombine.high %v381, %v381
    %v392 = vcombine.high %v388, %v388
    %v665 = vunpack.c.l.b16 %v30
    %v666 = vunpack.c.l.b16 %v31
    %v667 = vunpack.c.l.b16 %v32
    %v668 = vunpack.c.l.b16 %v33
    %v669 = vunpack.c.l.b16 %v34
    %v670 = vunpack.c.l.b16 %v35
    %v671 = vunpack.c.l.b16 %v36
    %v672 = vunpack.c.l.b16 %v37
    %v673 = vunpack.c.l.b16 %v38
    %v674 = vunpack.c.l.b16 %v39
    %v675 = vunpack.c.l.b16 %v40
    %v676 = vunpack.c.l.b16 %v41
    %v677 = vunpack.c.l.b16 %v42
    %v678 = vunpack.c.l.b16 %v43
    %v679 = vunpack.c.l.b16 %v44
    %v680 = vunpack.c.l.b16 %v45
    %v681 = vunpack.c.l.b16 %v46
    %v682 = vunpack.c.l.b16 %v47
    %v683 = vunpack.c.l.b16 %v48
    %v684 = vunpack.c.l.b16 %v49
    %v685 = vunpack.c.l.b16 %v50
    %v686 = vunpack.c.l.b16 %v51
    %v687 = vunpack.c.l.b16 %v52
    %v688 = vunpack.c.l.b16 %v53
    %v689 = vunpack.c.l.b16 %v54
    %v690 = vunpack.c.l.b16 %v55
    %v691 = vunpack.c.l.b16 %v56
    %v692 = vunpack.c.l.b16 %v57
    %v693 = vunpack.c.l.b16 %v58
    %v694 = vunpack.c.l.b16 %v59
    %v695 = vunpack.c.l.b16 %v60
    %v696 = vunpack.c.l.b16 %v61
    %v697 = vunpack.c.l.b16 %v62
    %v698 = vunpack.c.l.b16 %v63
    %v699 = vunpack.c.l.b16 %v64
    %v700 = vunpack.c.l.b16 %v65
    %v701 = vunpack.c.l.b16 %v66
    %v702 = vunpack.c.l.b16 %v67
    %v703 = vunpack.c.l.b16 %v68
    %v704 = vunpack.c.l.b16 %v69
    %v705 = vunpack.c.l.b16 %v70
    %v706 = vunpack.c.l.b16 %v71
    %v707 = vunpack.c.l.b16 %v72
    %v708 = vunpack.c.l.b16 %v73
    %v709 = vunpack.c.l.b16 %v74
    %v710 = vunpack.c.l.b16 %v75
    %v711 = vunpack.c.l.b16 %v76
    %v712 = vunpack.c.l.b16 %v77
    %v713 = vunpack.c.l.b16 %v78
    %v714 = vunpack.c.l.b16 %v79
    %v715 = vunpack.c.l.b16 %v80
    %v716 = vunpack.c.l.b16 %v81
    %v717 = vunpack.c.l.b16 %v82
    %v718 = vunpack.c.l.b16 %v83
    %v719 = vunpack.c.l.b16 %v84
    %v720 = vunpack.c.l.b16 %v85
    %v721 = vunpack.c.l.b16 %v86
    %v722 = vunpack.c.l.b16 %v87
    %v723 = vunpack.c.l.b16 %v88
    %v724 = vunpack.c.l.b16 %v89
    %v725 = vunpack.c.l.b16 %v90
    %v726 = vunpack.c.l.b16 %v91
    %v727 = vunpack.c.l.b16 %v92
    %v728 = vunpack.c.l.b16 %v93
    %v729 = vunpack.c.l.b16 %v94
    %v730 = vunpack.c.l.b16 %v95
    %v731 = vunpack.c.l.b16 %v96
    %v732 = vunpack.c.l.b16 %v97
    %v733 = vunpack.c.l.b16 %v98
    %v734 = vunpack.c.l.b16 %v99
    %v735 = vunpack.c.l.b16 %v100
    %v736 = vunpack.c.l.b16 %v101
    %v737 = vunpack.c.l.b16 %v102
    %v738 = vunpack.c.l.b16 %v103
    %v739 = vunpack.c.l.b16 %v104
    %v740 = vunpack.c.l.b16 %v105
    %v741 = vunpack.c.l.b16 %v106
    %v742 = vunpack.c.l.b16 %v107
    %v743 = vunpack.c.l.b16 %v108
    %v744 = vunpack.c.l.b16 %v109
    %v745 = vunpack.c.l.b16 %v110
    %v746 = vunpack.c.l.b16 %v111
    %v747 = vunpack.c.l.b16 %v112
    %v748 = vunpack.c.l.b16 %v113
    %v749 = vunpack.c.l.b16 %v114
    %v750 = vunpack.c.l.b16 %v115
    %v751 = vunpack.c.l.b16 %v116
    %v752 = vunpack.c.l.b16 %v117
    %v753 = vunpack.c.l.b16 %v118
    %v754 = vunpack.c.l.b16 %v119
    %v755 = vunpack.c.l.b16 %v120
    %v756 = vunpack.c.l.b16 %v121
    %v757 = vunpack.c.l.b16 %v122
    %v758 = vunpack.c.l.b16 %v123
    %v759 = vunpack.c.l.b16 %v124
    %v760 = vunpack.c.l.b16 %v125
    %v761 = vunpack.c.l.b16 %v126
    %v762 = vunpack.c.l.b16 %v127
    %v763 = vunpack.c.l.b16 %v128
    %v764 = vunpack.c.l.b16 %v129
    %v765 = vunpack.c.l.b16 %v130
    %v766 = vunpack.c.l.b16 %v131
    %v767 = vunpack.c.l.b16 %v132
    %v768 = vunpack.c.l.b16 %v133
    %v769 = vunpack.c.l.b16 %v134
    %v770 = vunpack.c.l.b16 %v135
    %v771 = vunpack.c.l.b16 %v136
    %v772 = vunpack.c.l.b16 %v137
    %v773 = vunpack.c.l.b16 %v138
    %v774 = vunpack.c.l.b16 %v139
    %v775 = vunpack.c.l.b16 %v140
    %v776 = vunpack.c.l.b16 %v141
    %v777 = vunpack.c.l.b16 %v142
    %v778 = vunpack.c.l.b16 %v143
    %v779 = vunpack.c.l.b16 %v144
    %v780 = vunpack.c.l.b16 %v145
    %v781 = vunpack.c.l.b16 %v146
    %v782 = vunpack.c.l.b16 %v147
    %v783 = vunpack.c.l.b16 %v148
    %v784 = vunpack.c.l.b16 %v149
    %v785 = vunpack.c.l.b16 %v150
    %v786 = vunpack.c.l.b16 %v151
    %v787 = vunpack.c.l.b16 %v152
    %v788 = vunpack.c.l.b16 %v153
    %v789 = vunpack.c.l.b16 %v154
    %v790 = vunpack.c.l.b16 %v155
    %v791 = vunpack.c.l.b16 %v156
    %v792 = vunpack.c.l.b16 %v157
    %v793 = vunpack.c.l.b16 %v158
    %v794 = vunpack.c.l.b16 %v159
    %v795 = vunpack.c.l.b16 %v160
    %v796 = vunpack.c.l.b16 %v161
    %v797 = vunpack.c.l.b16 %v162
    %v798 = vunpack.c.l.b16 %v163
    %v799 = vunpack.c.l.b16 %v164
    %v800 = vunpack.c.l.b16 %v165
    %v801 = vunpack.c.l.b16 %v166
    %v802 = vunpack.c.l.b16 %v167
    %v803 = vunpack.c.l.b16 %v168
    %v804 = vunpack.c.l.b16 %v169
    %v805 = vunpack.c.l.b16 %v170
    %v806 = vunpack.c.l.b16 %v171
    %v807 = vunpack.c.l.b16 %v172
    %v808 = vunpack.c.l.b16 %v173
    %v809 = vunpack.c.l.b16 %v174
    %v810 = vunpack.c.l.b16 %v175
    %v811 = vunpack.c.l.b16 %v176
    %v812 = vunpack.c.l.b16 %v177
    %v813 = vunpack.c.l.b16 %v178
    %v814 = vunpack.c.l.b16 %v179
    %v815 = vunpack.c.l.b16 %v180
    %v816 = vunpack.c.l.b16 %v181
    %v817 = vunpack.c.l.b16 %v182
    %v818 = vunpack.c.l.b16 %v183
    %v819 = vunpack.c.l.b16 %v184
    %v820 = vunpack.c.l.b16 %v185
    %v821 = vunpack.c.l.b16 %v186
    %v822 = vunpack.c.l.b16 %v187
    %v823 = vunpack.c.l.b16 %v188
    %v824 = vunpack.c.l.b16 %v189
    %v825 = vunpack.c.l.b16 %v190
    %v826 = vunpack.c.l.b16 %v191
    %v827 = vunpack.c.l.b16 %v192
    %v828 = vunpack.c.l.b16 %v193
    %v829 = vunpack.c.l.b16 %v194
    %v830 = vunpack.c.l.b16 %v195
    %v831 = vunpack.c.l.b16 %v196
    %v832 = vunpack.c.l.b16 %v197
    %v833 = vunpack.c.l.b16 %v198
    %v834 = vunpack.c.l.b16 %v199
    %v835 = vunpack.c.l.b16 %v200
    %v836 = vunpack.c.l.b16 %v201
    %v837 = vunpack.c.l.b16 %v202
    %v838 = vunpack.c.l.b16 %v203
    %v839 = vunpack.c.l.b16 %v204
    %v840 = vunpack.c.l.b16 %v205
    %v841 = vunpack.c.l.b16 %v206
    %v842 = vunpack.c.l.b16 %v207
    %v843 = vunpack.c.l.b16 %v208
    %v844 = vunpack.c.l.b16 %v209
    %v845 = vunpack.c.l.b16 %v210
    %v846 = vunpack.c.l.b16 %v211
    %v847 = vunpack.c.l.b16 %v212
    %v848 = vunpack.c.l.b16 %v213
    %v849 = vunpack.c.l.b16 %v214
    %v850 = vunpack.c.l.b16 %v215
    %v851 = vunpack.c.l.b16 %v216
    %v852 = vunpack.c.l.b16 %v217
    %v853 = vunpack.c.l.b16 %v218
    %v854 = vunpack.c.l.b16 %v219
    %v855 = vunpack.c.l.b16 %v220
    %v856 = vunpack.c.l.b16 %v221
    %v857 = vunpack.c.l.b16 %v222
    %v858 = vunpack.c.l.b16 %v223
    %v859 = vunpack.c.l.b16 %v224
    %v860 = vunpack.c.l.b16 %v225
    %v861 = vunpack.c.l.b16 %v226
    %v862 = vunpack.c.l.b16 %v227
    %v863 = vunpack.c.l.b16 %v228
    %v864 = vunpack.c.l.b16 %v229
    %v865 = vunpack.c.l.b16 %v230
    %v866 = vunpack.c.l.b16 %v231
    %v867 = vunpack.c.l.b16 %v232
    %v868 = vunpack.c.l.b16 %v233
    %v869 = vunpack.c.l.b16 %v234
    %v870 = vunpack.c.l.b16 %v235
    %v871 = vunpack.c.l.b16 %v236
    %v872 = vunpack.c.l.b16 %v237
    %v873 = vunpack.c.l.b16 %v238
    %v874 = vunpack.c.l.b16 %v239
    %v875 = vunpack.c.l.b16 %v240
    %v876 = vunpack.c.l.b16 %v241
    %v877 = vunpack.c.l.b16 %v242
    %v878 = vunpack.c.l.b16 %v243
    %v879 = vunpack.c.l.b16 %v244
    %v880 = vunpack.c.l.b16 %v245
    %v881 = vunpack.c.l.b16 %v246
    %v882 = vunpack.c.l.b16 %v247
    %v883 = vunpack.c.l.b16 %v248
    %v884 = vunpack.c.l.b16 %v249
    %v885 = vunpack.c.l.b16 %v250
    %v886 = vunpack.c.l.b16 %v251
    %v887 = vunpack.c.l.b16 %v252
    %v888 = vunpack.c.l.b16 %v253
    %v889 = vunpack.c.l.b16 %v254
    %v890 = vunpack.c.l.b16 %v255
    %v891 = vunpack.c.l.b16 %v256
    %v892 = vunpack.c.l.b16 %v257
    %v893 = vunpack.c.l.b16 %v258
    %v894 = vunpack.c.l.b16 %v259
    %v895 = vunpack.c.l.b16 %v260
    %v896 = vunpack.c.l.b16 %v261
    %v897 = vunpack.c.l.b16 %v262
    %v898 = vunpack.c.l.b16 %v263
    %v899 = vunpack.c.l.b16 %v264
    %v900 = vunpack.c.l.b16 %v265
    %v901 = vunpack.c.l.b16 %v266
    %v902 = vunpack.c.l.b16 %v267
    %v903 = vunpack.c.l.b16 %v268
    %v904 = vunpack.c.l.b16 %v269
    %v905 = vunpack.c.l.b16 %v270
    %v906 = vunpack.c.l.b16 %v271
    %v907 = vunpack.c.l.b16 %v272
    %v908 = vunpack.c.l.b16 %v273
    %v909 = vunpack.c.l.b16 %v274
    %v910 = vunpack.c.l.b16 %v275
    %v911 = vunpack.c.l.b16 %v276
    %v912 = vunpack.c.l.b16 %v277
    %v913 = vunpack.c.l.b16 %v278
    %v914 = vunpack.c.l.b16 %v279
    %v915 = vunpack.c.l.b16 %v280
    %v916 = vunpack.c.l.b16 %v281
    %v917 = vunpack.c.l.b16 %v282
    %v918 = vunpack.c.l.b16 %v283
    %v919 = vunpack.c.l.b16 %v284
    %v920 = vunpack.c.l.b16 %v285
    %v921 = vpack.c.b16 %v666, %v665
    %v922 = vpack.c.b16 %v668, %v667
    %v923 = vpack.c.b16 %v670, %v669
    %v924 = vpack.c.b16 %v672, %v671
    %v925 = vpack.c.b16 %v674, %v673
    %v926 = vpack.c.b16 %v676, %v675
    %v927 = vpack.c.b16 %v678, %v677
    %v928 = vpack.c.b16 %v680, %v679
    %v929 = vpack.c.b16 %v682, %v681
    %v930 = vpack.c.b16 %v684, %v683
    %v931 = vpack.c.b16 %v686, %v685
    %v932 = vpack.c.b16 %v688, %v687
    %v933 = vpack.c.b16 %v690, %v689
    %v934 = vpack.c.b16 %v692, %v691
    %v935 = vpack.c.b16 %v694, %v693
    %v936 = vpack.c.b16 %v696, %v695
    %v937 = vpack.c.b16 %v698, %v697
    %v938 = vpack.c.b16 %v700, %v699
    %v939 = vpack.c.b16 %v702, %v701
    %v940 = vpack.c.b16 %v704, %v703
    %v941 = vpack.c.b16 %v706, %v705
    %v942 = vpack.c.b16 %v708, %v707
    %v943 = vpack.c.b16 %v710, %v709
    %v944 = vpack.c.b16 %v712, %v711
    %v945 = vpack.c.b16 %v714, %v713
    %v946 = vpack.c.b16 %v716, %v715
    %v947 = vpack.c.b16 %v718, %v717
    %v948 = vpack.c.b16 %v720, %v719
    %v949 = vpack.c.b16 %v722, %v721
    %v950 = vpack.c.b16 %v724, %v723
    %v951 = vpack.c.b16 %v726, %v725
    %v952 = vpack.c.b16 %v728, %v727
    %v953 = vpack.c.b16 %v730, %v729
    %v954 = vpack.c.b16 %v732, %v731
    %v955 = vpack.c.b16 %v734, %v733
    %v956 = vpack.c.b16 %v736, %v735
    %v957 = vpack.c.b16 %v738, %v737
    %v958 = vpack.c.b16 %v740, %v739
    %v959 = vpack.c.b16 %v742, %v741
    %v960 = vpack.c.b16 %v744, %v743
    %v961 = vpack.c.b16 %v746, %v745
    %v962 = vpack.c.b16 %v748, %v747
    %v963 = vpack.c.b16 %v750, %v749
    %v964 = vpack.c.b16 %v752, %v751
    %v965 = vpack.c.b16 %v754, %v753
    %v966 = vpack.c.b16 %v756, %v755
    %v967 = vpack.c.b16 %v758, %v757
    %v968 = vpack.c.b16 %v760, %v759
    %v969 = vpack.c.b16 %v762, %v761
    %v970 = vpack.c.b16 %v764, %v763
    %v971 = vpack.c.b16 %v766, %v765
    %v972 = vpack.c.b16 %v768, %v767
    %v973 = vpack.c.b16 %v770, %v769
    %v974 = vpack.c.b16 %v772, %v771
    %v975 = vpack.c.b16 %v774, %v773
    %v976 = vpack.c.b16 %v776, %v775
    %v977 = vpack.c.b16 %v778, %v777
    %v978 = vpack.c.b16 %v780, %v779
    %v979 = vpack.c.b16 %v782, %v781
    %v980 = vpack.c.b16 %v784, %v783
    %v981 = vpack.c.b16 %v786, %v785
    %v982 = vpack.c.b16 %v788, %v787
    %v983 = vpack.c.b16 %v790, %v789
    %v984 = vpack.c.b16 %v792, %v791
    %v985 = vpack.c.b16 %v794, %v793
    %v986 = vpack.c.b16 %v796, %v795
    %v987 = vpack.c.b16 %v798, %v797
    %v988 = vpack.c.b16 %v800, %v799
    %v989 = vpack.c.b16 %v802, %v801
    %v990 = vpack.c.b16 %v804, %v803
    %v991 = vpack.c.b16 %v806, %v805
    %v992 = vpack.c.b16 %v808, %v807
    %v993 = vpack.c.b16 %v810, %v809
    %v994 = vpack.c.b16 %v812, %v811
    %v995 = vpack.c.b16 %v814, %v813
    %v996 = vpack.c.b16 %v816, %v815
    %v997 = vpack.c.b16 %v818, %v817
    %v998 = vpack.c.b16 %v820, %v819
    %v999 = vpack.c.b16 %v822, %v821
    %v1000 = vpack.c.b16 %v824, %v823
    %v1001 = vpack.c.b16 %v826, %v825
    %v1002 = vpack.c.b16 %v828, %v827
    %v1003 = vpack.c.b16 %v830, %v829
    %v1004 = vpack.c.b16 %v832, %v831
    %v1005 = vpack.c.b16 %v834, %v833
    %v1006 = vpack.c.b16 %v836, %v835
    %v1007 = vpack.c.b16 %v838, %v837
    %v1008 = vpack.c.b16 %v840, %v839
    %v1009 = vpack.c.b16 %v842, %v841
    %v1010 = vpack.c.b16 %v844, %v843
    %v1011 = vpack.c.b16 %v846, %v845
    %v1012 = vpack.c.b16 %v848, %v847
    %v1013 = vpack.c.b16 %v850, %v849
    %v1014 = vpack.c.b16 %v852, %v851
    %v1015 = vpack.c.b16 %v854, %v853
    %v1016 = vpack.c.b16 %v856, %v855
    %v1017 = vpack.c.b16 %v858, %v857
    %v1018 = vpack.c.b16 %v860, %v859
    %v1019 = vpack.c.b16 %v862, %v861
    %v1020 = vpack.c.b16 %v864, %v863
    %v1021 = vpack.c.b16 %v866, %v865
    %v1022 = vpack.c.b16 %v868, %v867
    %v1023 = vpack.c.b16 %v870, %v869
    %v1024 = vpack.c.b16 %v872, %v871
    %v1025 = vpack.c.b16 %v874, %v873
    %v1026 = vpack.c.b16 %v876, %v875
    %v1027 = vpack.c.b16 %v878, %v877
    %v1028 = vpack.c.b16 %v880, %v879
    %v1029 = vpack.c.b16 %v882, %v881
    %v1030 = vpack.c.b16 %v884, %v883
    %v1031 = vpack.c.b16 %v886, %v885
    %v1032 = vpack.c.b16 %v888, %v887
    %v1033 = vpack.c.b16 %v890, %v889
    %v1034 = vpack.c.b16 %v892, %v891
    %v1035 = vpack.c.b16 %v894, %v893
    %v1036 = vpack.c.b16 %v896, %v895
    %v1037 = vpack.c.b16 %v898, %v897
    %v1038 = vpack.c.b16 %v900, %v899
    %v1039 = vpack.c.b16 %v902, %v901
    %v1040 = vpack.c.b16 %v904, %v903
    %v1041 = vpack.c.b16 %v906, %v905
    %v1042 = vpack.c.b16 %v908, %v907
    %v1043 = vpack.c.b16 %v910, %v909
    %v1044 = vpack.c.b16 %v912, %v911
    %v1045 = vpack.c.b16 %v914, %v913
    %v1046 = vpack.c.b16 %v916, %v915
    %v1047 = vpack.c.b16 %v918, %v917
    %v1048 = vpack.c.b16 %v920, %v919
    %1177 = vmatprep.subr.bf16.mxu0 0
    %1178 = vmatpush1.bf16.msra.mxu0 %v921
    %1179 = vmatprep.subr.bf16.mxu0 0
    %1180 = vmatpush1.bf16.msra.mxu0 %v922
    %1181 = vmatprep.subr.bf16.mxu0 0
    %1182 = vmatpush1.bf16.msra.mxu0 %v923
    %1183 = vmatprep.subr.bf16.mxu0 0
    %1184 = vmatpush1.bf16.msra.mxu0 %v924
    %1185 = vmatprep.subr.bf16.mxu0 0
    %1186 = vmatpush1.bf16.msra.mxu0 %v925
    %1187 = vmatprep.subr.bf16.mxu0 0
    %1188 = vmatpush1.bf16.msra.mxu0 %v926
    %1189 = vmatprep.subr.bf16.mxu0 0
    %1190 = vmatpush1.bf16.msra.mxu0 %v927
    %1191 = vmatprep.subr.bf16.mxu0 0
    %1192 = vmatpush1.bf16.msra.mxu0 %v928
    %1193 = vmatprep.subr.bf16.mxu0 0
    %1194 = vmatpush1.bf16.msra.mxu0 %v929
    %1195 = vmatprep.subr.bf16.mxu0 0
    %1196 = vmatpush1.bf16.msra.mxu0 %v930
    %1197 = vmatprep.subr.bf16.mxu0 0
    %1198 = vmatpush1.bf16.msra.mxu0 %v931
    %1199 = vmatprep.subr.bf16.mxu0 0
    %1200 = vmatpush1.bf16.msra.mxu0 %v932
    %1201 = vmatprep.subr.bf16.mxu0 0
    %1202 = vmatpush1.bf16.msra.mxu0 %v933
    %1203 = vmatprep.subr.bf16.mxu0 0
    %1204 = vmatpush1.bf16.msra.mxu0 %v934
    %1205 = vmatprep.subr.bf16.mxu0 0
    %1206 = vmatpush1.bf16.msra.mxu0 %v935
    %1207 = vmatprep.subr.bf16.mxu0 0
    %1208 = vmatpush1.bf16.msra.mxu0 %v936
    %1209 = vmatprep.mubr.bf16.mxu0 %v332
    %1210 = vmatmul.mubr.bf16.gmra.mrb[0].mxu0 %v318
    %v1211 = vpop.f32.mrb[0].mxu0
    %v1212 = vadd.f32 %v291, %v1211
    %v1213 = vpop.f32.mrb[0].mxu0
    %v1214 = vpop.f32.mrb[0].mxu0
    %v1215 = vpop.f32.mrb[0].mxu0
    %1216 = vdwg.mxu0
    %1217 = vmatprep.subr.bf16.mxu0 0
    %1218 = vmatpush1.bf16.msra.mxu0 %v937
    %1219 = vmatprep.subr.bf16.mxu0 0
    %1220 = vmatpush1.bf16.msra.mxu0 %v938
    %1221 = vmatprep.subr.bf16.mxu0 0
    %1222 = vmatpush1.bf16.msra.mxu0 %v939
    %1223 = vmatprep.subr.bf16.mxu0 0
    %1224 = vmatpush1.bf16.msra.mxu0 %v940
    %1225 = vmatprep.subr.bf16.mxu0 0
    %1226 = vmatpush1.bf16.msra.mxu0 %v941
    %1227 = vmatprep.subr.bf16.mxu0 0
    %1228 = vmatpush1.bf16.msra.mxu0 %v942
    %1229 = vmatprep.subr.bf16.mxu0 0
    %1230 = vmatpush1.bf16.msra.mxu0 %v943
    %1231 = vmatprep.subr.bf16.mxu0 0
    %1232 = vmatpush1.bf16.msra.mxu0 %v944
    %1233 = vmatprep.subr.bf16.mxu0 0
    %1234 = vmatpush1.bf16.msra.mxu0 %v945
    %1235 = vmatprep.subr.bf16.mxu0 0
    %1236 = vmatpush1.bf16.msra.mxu0 %v946
    %1237 = vmatprep.subr.bf16.mxu0 0
    %1238 = vmatpush1.bf16.msra.mxu0 %v947
    %1239 = vmatprep.subr.bf16.mxu0 0
    %1240 = vmatpush1.bf16.msra.mxu0 %v948
    %1241 = vmatprep.subr.bf16.mxu0 0
    %1242 = vmatpush1.bf16.msra.mxu0 %v949
    %1243 = vmatprep.subr.bf16.mxu0 0
    %1244 = vmatpush1.bf16.msra.mxu0 %v950
    %1245 = vmatprep.subr.bf16.mxu0 0
    %1246 = vmatpush1.bf16.msra.mxu0 %v951
    %1247 = vmatprep.subr.bf16.mxu0 0
    %1248 = vmatpush1.bf16.msra.mxu0 %v952
    %1249 = vmatprep.mubr.bf16.mxu0 %v342
    %1250 = vmatmul.mubr.bf16.gmra.mrb[0].mxu0 %v340
    %v1251 = vpop.f32.mrb[0].mxu0
    %v1252 = vadd.f32 %v1212, %v1251
    %v1253 = vpop.f32.mrb[0].mxu0
    %v1254 = vpop.f32.mrb[0].mxu0
    %v1255 = vpop.f32.mrb[0].mxu0
    %1256 = vdwg.mxu0
    %1257 = vmatprep.subr.bf16.mxu0 0
    %1258 = vmatpush1.bf16.msra.mxu0 %v953
    %1259 = vmatprep.subr.bf16.mxu0 0
    %1260 = vmatpush1.bf16.msra.mxu0 %v954
    %1261 = vmatprep.subr.bf16.mxu0 0
    %1262 = vmatpush1.bf16.msra.mxu0 %v955
    %1263 = vmatprep.subr.bf16.mxu0 0
    %1264 = vmatpush1.bf16.msra.mxu0 %v956
    %1265 = vmatprep.subr.bf16.mxu0 0
    %1266 = vmatpush1.bf16.msra.mxu0 %v957
    %1267 = vmatprep.subr.bf16.mxu0 0
    %1268 = vmatpush1.bf16.msra.mxu0 %v958
    %1269 = vmatprep.subr.bf16.mxu0 0
    %1270 = vmatpush1.bf16.msra.mxu0 %v959
    %1271 = vmatprep.subr.bf16.mxu0 0
    %1272 = vmatpush1.bf16.msra.mxu0 %v960
    %1273 = vmatprep.subr.bf16.mxu0 0
    %1274 = vmatpush1.bf16.msra.mxu0 %v961
    %1275 = vmatprep.subr.bf16.mxu0 0
    %1276 = vmatpush1.bf16.msra.mxu0 %v962
    %1277 = vmatprep.subr.bf16.mxu0 0
    %1278 = vmatpush1.bf16.msra.mxu0 %v963
    %1279 = vmatprep.subr.bf16.mxu0 0
    %1280 = vmatpush1.bf16.msra.mxu0 %v964
    %1281 = vmatprep.subr.bf16.mxu0 0
    %1282 = vmatpush1.bf16.msra.mxu0 %v965
    %1283 = vmatprep.subr.bf16.mxu0 0
    %1284 = vmatpush1.bf16.msra.mxu0 %v966
    %1285 = vmatprep.subr.bf16.mxu0 0
    %1286 = vmatpush1.bf16.msra.mxu0 %v967
    %1287 = vmatprep.subr.bf16.mxu0 0
    %1288 = vmatpush1.bf16.msra.mxu0 %v968
    %1289 = vmatprep.mubr.bf16.mxu0 %v339
    %1290 = vmatmul.mubr.bf16.gmra.mrb[0].mxu0 %v325
    %v1291 = vpop.f32.mrb[0].mxu0
    %v1292 = vadd.f32 %v1252, %v1291
    %v1293 = vpop.f32.mrb[0].mxu0
    %v1294 = vpop.f32.mrb[0].mxu0
    %v1295 = vpop.f32.mrb[0].mxu0
    %1296 = vdwg.mxu0
    %1297 = vmatprep.subr.bf16.mxu0 0
    %1298 = vmatpush1.bf16.msra.mxu0 %v969
    %1299 = vmatprep.subr.bf16.mxu0 0
    %1300 = vmatpush1.bf16.msra.mxu0 %v970
    %1301 = vmatprep.subr.bf16.mxu0 0
    %1302 = vmatpush1.bf16.msra.mxu0 %v971
    %1303 = vmatprep.subr.bf16.mxu0 0
    %1304 = vmatpush1.bf16.msra.mxu0 %v972
    %1305 = vmatprep.subr.bf16.mxu0 0
    %1306 = vmatpush1.bf16.msra.mxu0 %v973
    %1307 = vmatprep.subr.bf16.mxu0 0
    %1308 = vmatpush1.bf16.msra.mxu0 %v974
    %1309 = vmatprep.subr.bf16.mxu0 0
    %1310 = vmatpush1.bf16.msra.mxu0 %v975
    %1311 = vmatprep.subr.bf16.mxu0 0
    %1312 = vmatpush1.bf16.msra.mxu0 %v976
    %1313 = vmatprep.subr.bf16.mxu0 0
    %1314 = vmatpush1.bf16.msra.mxu0 %v977
    %1315 = vmatprep.subr.bf16.mxu0 0
    %1316 = vmatpush1.bf16.msra.mxu0 %v978
    %1317 = vmatprep.subr.bf16.mxu0 0
    %1318 = vmatpush1.bf16.msra.mxu0 %v979
    %1319 = vmatprep.subr.bf16.mxu0 0
    %1320 = vmatpush1.bf16.msra.mxu0 %v980
    %1321 = vmatprep.subr.bf16.mxu0 0
    %1322 = vmatpush1.bf16.msra.mxu0 %v981
    %1323 = vmatprep.subr.bf16.mxu0 0
    %1324 = vmatpush1.bf16.msra.mxu0 %v982
    %1325 = vmatprep.subr.bf16.mxu0 0
    %1326 = vmatpush1.bf16.msra.mxu0 %v983
    %1327 = vmatprep.subr.bf16.mxu0 0
    %1328 = vmatpush1.bf16.msra.mxu0 %v984
    %1329 = vmatprep.mubr.bf16.mxu0 %v343
    %1330 = vmatmul.mubr.bf16.gmra.mrb[0].mxu0 %v341
    %v1331 = vpop.f32.mrb[0].mxu0
    %v1332 = vadd.f32 %v1292, %v1331
    %v1333 = vpop.f32.mrb[0].mxu0
    %v1334 = vpop.f32.mrb[0].mxu0
    %v1335 = vpop.f32.mrb[0].mxu0
    %1336 = vdwg.mxu0
    %1337 = vmatprep.subr.bf16.mxu0 0
    %1338 = vmatpush1.bf16.msra.mxu0 %v985
    %1339 = vmatprep.subr.bf16.mxu0 0
    %1340 = vmatpush1.bf16.msra.mxu0 %v986
    %1341 = vmatprep.subr.bf16.mxu0 0
    %1342 = vmatpush1.bf16.msra.mxu0 %v987
    %1343 = vmatprep.subr.bf16.mxu0 0
    %1344 = vmatpush1.bf16.msra.mxu0 %v988
    %1345 = vmatprep.subr.bf16.mxu0 0
    %1346 = vmatpush1.bf16.msra.mxu0 %v989
    %1347 = vmatprep.subr.bf16.mxu0 0
    %1348 = vmatpush1.bf16.msra.mxu0 %v990
    %1349 = vmatprep.subr.bf16.mxu0 0
    %1350 = vmatpush1.bf16.msra.mxu0 %v991
    %1351 = vmatprep.subr.bf16.mxu0 0
    %1352 = vmatpush1.bf16.msra.mxu0 %v992
    %1353 = vmatprep.subr.bf16.mxu0 0
    %1354 = vmatpush1.bf16.msra.mxu0 %v993
    %1355 = vmatprep.subr.bf16.mxu0 0
    %1356 = vmatpush1.bf16.msra.mxu0 %v994
    %1357 = vmatprep.subr.bf16.mxu0 0
    %1358 = vmatpush1.bf16.msra.mxu0 %v995
    %1359 = vmatprep.subr.bf16.mxu0 0
    %1360 = vmatpush1.bf16.msra.mxu0 %v996
    %1361 = vmatprep.subr.bf16.mxu0 0
    %1362 = vmatpush1.bf16.msra.mxu0 %v997
    %1363 = vmatprep.subr.bf16.mxu0 0
    %1364 = vmatpush1.bf16.msra.mxu0 %v998
    %1365 = vmatprep.subr.bf16.mxu0 0
    %1366 = vmatpush1.bf16.msra.mxu0 %v999
    %1367 = vmatprep.subr.bf16.mxu0 0
    %1368 = vmatpush1.bf16.msra.mxu0 %v1000
    %1369 = vmatprep.mubr.bf16.mxu0 %v381
    %1370 = vmatmul.mubr.bf16.gmra.mrb[0].mxu0 %v367
    %v1371 = vpop.f32.mrb[0].mxu0
    %v1372 = vadd.f32 %v1332, %v1371
    %v1373 = vpop.f32.mrb[0].mxu0
    %v1374 = vpop.f32.mrb[0].mxu0
    %v1375 = vpop.f32.mrb[0].mxu0
    %1376 = vdwg.mxu0
    %1377 = vmatprep.subr.bf16.mxu0 0
    %1378 = vmatpush1.bf16.msra.mxu0 %v1001
    %1379 = vmatprep.subr.bf16.mxu0 0
    %1380 = vmatpush1.bf16.msra.mxu0 %v1002
    %1381 = vmatprep.subr.bf16.mxu0 0
    %1382 = vmatpush1.bf16.msra.mxu0 %v1003
    %1383 = vmatprep.subr.bf16.mxu0 0
    %1384 = vmatpush1.bf16.msra.mxu0 %v1004
    %1385 = vmatprep.subr.bf16.mxu0 0
    %1386 = vmatpush1.bf16.msra.mxu0 %v1005
    %1387 = vmatprep.subr.bf16.mxu0 0
    %1388 = vmatpush1.bf16.msra.mxu0 %v1006
    %1389 = vmatprep.subr.bf16.mxu0 0
    %1390 = vmatpush1.bf16.msra.mxu0 %v1007
    %1391 = vmatprep.subr.bf16.mxu0 0
    %1392 = vmatpush1.bf16.msra.mxu0 %v1008
    %1393 = vmatprep.subr.bf16.mxu0 0
    %1394 = vmatpush1.bf16.msra.mxu0 %v1009
    %1395 = vmatprep.subr.bf16.mxu0 0
    %1396 = vmatpush1.bf16.msra.mxu0 %v1010
    %1397 = vmatprep.subr.bf16.mxu0 0
    %1398 = vmatpush1.bf16.msra.mxu0 %v1011
    %1399 = vmatprep.subr.bf16.mxu0 0
    %1400 = vmatpush1.bf16.msra.mxu0 %v1012
    %1401 = vmatprep.subr.bf16.mxu0 0
    %1402 = vmatpush1.bf16.msra.mxu0 %v1013
    %1403 = vmatprep.subr.bf16.mxu0 0
    %1404 = vmatpush1.bf16.msra.mxu0 %v1014
    %1405 = vmatprep.subr.bf16.mxu0 0
    %1406 = vmatpush1.bf16.msra.mxu0 %v1015
    %1407 = vmatprep.subr.bf16.mxu0 0
    %1408 = vmatpush1.bf16.msra.mxu0 %v1016
    %1409 = vmatprep.mubr.bf16.mxu0 %v391
    %1410 = vmatmul.mubr.bf16.gmra.mrb[0].mxu0 %v389
    %v1411 = vpop.f32.mrb[0].mxu0
    %v1412 = vadd.f32 %v1372, %v1411
    %v1413 = vpop.f32.mrb[0].mxu0
    %v1414 = vpop.f32.mrb[0].mxu0
    %v1415 = vpop.f32.mrb[0].mxu0
    %1416 = vdwg.mxu0
    %1417 = vmatprep.subr.bf16.mxu0 0
    %1418 = vmatpush1.bf16.msra.mxu0 %v1017
    %1419 = vmatprep.subr.bf16.mxu0 0
    %1420 = vmatpush1.bf16.msra.mxu0 %v1018
    %1421 = vmatprep.subr.bf16.mxu0 0
    %1422 = vmatpush1.bf16.msra.mxu0 %v1019
    %1423 = vmatprep.subr.bf16.mxu0 0
    %1424 = vmatpush1.bf16.msra.mxu0 %v1020
    %1425 = vmatprep.subr.bf16.mxu0 0
    %1426 = vmatpush1.bf16.msra.mxu0 %v1021
    %1427 = vmatprep.subr.bf16.mxu0 0
    %1428 = vmatpush1.bf16.msra.mxu0 %v1022
    %1429 = vmatprep.subr.bf16.mxu0 0
    %1430 = vmatpush1.bf16.msra.mxu0 %v1023
    %1431 = vmatprep.subr.bf16.mxu0 0
    %1432 = vmatpush1.bf16.msra.mxu0 %v1024
    %1433 = vmatprep.subr.bf16.mxu0 0
    %1434 = vmatpush1.bf16.msra.mxu0 %v1025
    %1435 = vmatprep.subr.bf16.mxu0 0
    %1436 = vmatpush1.bf16.msra.mxu0 %v1026
    %1437 = vmatprep.subr.bf16.mxu0 0
    %1438 = vmatpush1.bf16.msra.mxu0 %v1027
    %1439 = vmatprep.subr.bf16.mxu0 0
    %1440 = vmatpush1.bf16.msra.mxu0 %v1028
    %1441 = vmatprep.subr.bf16.mxu0 0
    %1442 = vmatpush1.bf16.msra.mxu0 %v1029
    %1443 = vmatprep.subr.bf16.mxu0 0
    %1444 = vmatpush1.bf16.msra.mxu0 %v1030
    %1445 = vmatprep.subr.bf16.mxu0 0
    %1446 = vmatpush1.bf16.msra.mxu0 %v1031
    %1447 = vmatprep.subr.bf16.mxu0 0
    %1448 = vmatpush1.bf16.msra.mxu0 %v1032
    %1449 = vmatprep.mubr.bf16.mxu0 %v388
    %1450 = vmatmul.mubr.bf16.gmra.mrb[0].mxu0 %v374
    %v1451 = vpop.f32.mrb[0].mxu0
    %v1452 = vadd.f32 %v1412, %v1451
    %v1453 = vpop.f32.mrb[0].mxu0
    %v1454 = vpop.f32.mrb[0].mxu0
    %v1455 = vpop.f32.mrb[0].mxu0
    %1456 = vdwg.mxu0
    %1457 = vmatprep.subr.bf16.mxu0 0
    %1458 = vmatpush1.bf16.msra.mxu0 %v1033
    %1459 = vmatprep.subr.bf16.mxu0 0
    %1460 = vmatpush1.bf16.msra.mxu0 %v1034
    %1461 = vmatprep.subr.bf16.mxu0 0
    %1462 = vmatpush1.bf16.msra.mxu0 %v1035
    %1463 = vmatprep.subr.bf16.mxu0 0
    %1464 = vmatpush1.bf16.msra.mxu0 %v1036
    %1465 = vmatprep.subr.bf16.mxu0 0
    %1466 = vmatpush1.bf16.msra.mxu0 %v1037
    %1467 = vmatprep.subr.bf16.mxu0 0
    %1468 = vmatpush1.bf16.msra.mxu0 %v1038
    %1469 = vmatprep.subr.bf16.mxu0 0
    %1470 = vmatpush1.bf16.msra.mxu0 %v1039
    %1471 = vmatprep.subr.bf16.mxu0 0
    %1472 = vmatpush1.bf16.msra.mxu0 %v1040
    %1473 = vmatprep.subr.bf16.mxu0 0
    %1474 = vmatpush1.bf16.msra.mxu0 %v1041
    %1475 = vmatprep.subr.bf16.mxu0 0
    %1476 = vmatpush1.bf16.msra.mxu0 %v1042
    %1477 = vmatprep.subr.bf16.mxu0 0
    %1478 = vmatpush1.bf16.msra.mxu0 %v1043
    %1479 = vmatprep.subr.bf16.mxu0 0
    %1480 = vmatpush1.bf16.msra.mxu0 %v1044
    %1481 = vmatprep.subr.bf16.mxu0 0
    %1482 = vmatpush1.bf16.msra.mxu0 %v1045
    %1483 = vmatprep.subr.bf16.mxu0 0
    %1484 = vmatpush1.bf16.msra.mxu0 %v1046
    %1485 = vmatprep.subr.bf16.mxu0 0
    %1486 = vmatpush1.bf16.msra.mxu0 %v1047
    %1487 = vmatprep.subr.bf16.mxu0 0
    %1488 = vmatpush1.bf16.msra.mxu0 %v1048
    %1489 = vmatprep.mubr.bf16.mxu0 %v392
    %1490 = vmatmul.mubr.bf16.gmra.mrb[0].mxu0 %v390
    %v1491 = vpop.f32.mrb[0].mxu0
    %v1492 = vadd.f32 %v1452, %v1491
    %v1493 = vpop.f32.mrb[0].mxu0
    %v1494 = vpop.f32.mrb[0].mxu0
    %v1495 = vpop.f32.mrb[0].mxu0
    %1496 = vdwg.mxu0
    %v1497 = vld [vmem:[%s3] sm:$0x1]
    %v1498 = vld [vmem:[%s4] sm:$0x1]
    %v1499 = vmax.f32 %v1492, 0.0
    %vm1500 = vcmask 517120
    %v1501 = vsel %vm1500, %v1499, 0.0
    %v1502 = vrot.slane %v1501, 4
    %v1503 = vadd.f32 %v1501, %v1502
    %v1504 = vrot.slane %v1503, 2
    %v1505 = vadd.f32 %v1503, %v1504
    %v1506 = vrot.slane %v1505, 1
    %v1507 = vadd.f32 %v1505, %v1506
    %v1508 = vmul.f32 %v1507, 0.5
    %v1509 = vmul.f32 %v1499, %v1499
    %v1510 = vsel %vm1500, %v1509, 0.0
    %v1511 = vrot.slane %v1510, 4
    %v1512 = vadd.f32 %v1510, %v1511
    %v1513 = vrot.slane %v1512, 2
    %v1514 = vadd.f32 %v1512, %v1513
    %v1515 = vrot.slane %v1514, 1
    %v1516 = vadd.f32 %v1514, %v1515
    %v1517 = vmul.f32 %v1516, 0.5
    %v1518 = vmul.f32 %v1508, %v1508
    %v1519 = vsub.f32 %v1517, %v1518
    %v1520 = vmax.f32 %v1519, 0.0
    %v1521 = vsub.f32 %v1499, %v1508
    %v1522 = vadd.f32 %v1520, 1e-05
    %v1523 = vrsqrt.pop %v1522
    %v1524 = vmul.f32 %v1523, %v1497
    %v1525 = vlaneseq
    %v1526 = vshrl.u32 %v1525, 7
    %v1527 = vsub.s32 0, %v1526
    %v1528 = vrot.slane %v1524, %v1527
    %v1529 = vmul.f32 %v1521, %v1528
    %v1531 = vlaneseq
    %v1532 = vshrl.u32 %v1531, 7
    %v1533 = vsub.s32 0, %v1532
    %v1534 = vrot.slane %v1498, %v1533
    %v1536 = vadd.f32 %v1529, %v1534
    %v1537 = vpack.c.bf16 %v1536, %v1536
    %v1538 = vld [vmem:[%s5] sm:$0xf]
    %v1539 = vld [vmem:[%s5 + $0x4] sm:$0xf]
    %v1540 = vld [vmem:[%s5 + $0x8] sm:$0xf]
    %v1541 = vld [vmem:[%s5 + $0xc] sm:$0xf]
    %v1542 = vld [vmem:[%s5 + $0x10] sm:$0xf]
    %v1543 = vld [vmem:[%s5 + $0x14] sm:$0xf]
    %v1544 = vld [vmem:[%s5 + $0x18] sm:$0xf]
    %v1545 = vld [vmem:[%s5 + $0x1c] sm:$0xf]
    %v1546 = vld [vmem:[%s6] sm:$0x1]
    %v1548 = vlaneseq
    %v1549 = vshrl.u32 %v1548, 7
    %v1550 = vsub.s32 0, %v1549
    %v1551 = vrot.slane %v1546, %v1550
    %v1561 = vunpack.c.l.b16 %v1538
    %v1562 = vunpack.c.l.b16 %v1539
    %v1563 = vunpack.c.l.b16 %v1540
    %v1564 = vunpack.c.l.b16 %v1541
    %v1565 = vunpack.c.l.b16 %v1542
    %v1566 = vunpack.c.l.b16 %v1543
    %v1567 = vunpack.c.l.b16 %v1544
    %v1568 = vunpack.c.l.b16 %v1545
    %v1569 = vpack.c.b16 %v1562, %v1561
    %v1570 = vpack.c.b16 %v1564, %v1563
    %v1571 = vpack.c.b16 %v1566, %v1565
    %v1572 = vpack.c.b16 %v1568, %v1567
    %vm1577 = vcmask 523264
    %v1579 = vsel %vm1577, %v1537, 0
    %1581 = vmatprep.subr.bf16.mxu0 0
    %1582 = vmatpush1.bf16.msra.mxu0 %v1569
    %1583 = vmatprep.subr.bf16.mxu0 0
    %1584 = vmatpush1.bf16.msra.mxu0 %v1570
    %1585 = vmatprep.subr.bf16.mxu0 0
    %1586 = vmatpush1.bf16.msra.mxu0 %v1571
    %1587 = vmatprep.subr.bf16.mxu0 0
    %1588 = vmatpush1.bf16.msra.mxu0 %v1572
    %1589 = vmatprep.subr.bf16.mxu0 0
    %1590 = vmatpush1.bf16.msra.mxu0 0
    %1591 = vmatprep.subr.bf16.mxu0 0
    %1592 = vmatpush1.bf16.msra.mxu0 0
    %1593 = vmatprep.subr.bf16.mxu0 0
    %1594 = vmatpush1.bf16.msra.mxu0 0
    %1595 = vmatprep.subr.bf16.mxu0 0
    %1596 = vmatpush1.bf16.msra.mxu0 0
    %1597 = vmatprep.subr.bf16.mxu0 0
    %1598 = vmatpush1.bf16.msra.mxu0 0
    %1599 = vmatprep.subr.bf16.mxu0 0
    %1600 = vmatpush1.bf16.msra.mxu0 0
    %1601 = vmatprep.subr.bf16.mxu0 0
    %1602 = vmatpush1.bf16.msra.mxu0 0
    %1603 = vmatprep.subr.bf16.mxu0 0
    %1604 = vmatpush1.bf16.msra.mxu0 0
    %1605 = vmatprep.subr.bf16.mxu0 0
    %1606 = vmatpush1.bf16.msra.mxu0 0
    %1607 = vmatprep.subr.bf16.mxu0 0
    %1608 = vmatpush1.bf16.msra.mxu0 0
    %1609 = vmatprep.subr.bf16.mxu0 0
    %1610 = vmatpush1.bf16.msra.mxu0 0
    %1611 = vmatprep.subr.bf16.mxu0 0
    %1612 = vmatpush1.bf16.msra.mxu0 0
    %1613 = vmatprep.mubr.bf16.mxu0 0
    %1614 = vmatmul.mubr.bf16.gmra.mrb[0].mxu0 %v1579
    %v1615 = vpop.f32.mrb[0].mxu0
    %v1616 = vadd.f32 %v1551, %v1615
    %v1617 = vpop.f32.mrb[0].mxu0
    %v1618 = vpop.f32.mrb[0].mxu0
    %v1619 = vpop.f32.mrb[0].mxu0
    %1620 = vdwg.mxu0
    %1621 = vst.msk [vmem:[#allocation2] sm:$0x3] %vm1500, %v1616
    // Predicated region
    $region30: #{encoder_forward.3} parent=1 // pred_check
      _
    $region31: #{encoder_forward.3} parent=1 // pred_check_branch
      %1623 = sbr.rel (0) target = $region33
    $region32: #{encoder_forward.3} parent=1 // pred_region
      %s1625 = ssub.s32 32, 32
      %1626 = vsyncadd [#allocation3], %s1625
      %s1628 = sshll.u32 [#allocation2], 4
      %s1629 = int_to_ptr.vmem [resolvable:$true] %s1628
      %1631 = dma.vmem_to_hbm [thread:$0]  %s1629, 32, %s7, [#allocation3]
    $region33: #{encoder_forward.3} parent=1 // pred_fallthru
      _
    // Predicated region
    $region34: #{encoder_forward.3} parent=1 // pred_check
      _
    $region35: #{encoder_forward.3} parent=1 // pred_check_branch
      %1633 = sbr.rel (0) target = $region37
    $region36: #{encoder_forward.3} parent=1 // pred_region
      %1634 = dma.done [#allocation3], 32
    $region37: #{encoder_forward.3} parent=1 // pred_fallthru
      _
    %1635 = vsyncpa [#allocation3], 1

</llo_original>
